<compile_context>
chip_gen: v6e
topology: v6e:2x2x1
jax: 0.10.0
libtpu: 0.0.40
codegen_flags: <defaults>
</compile_context>

<pallas_src>
import jax
import jax.numpy as jnp
from jax import lax
from jax.experimental import pallas as pl
from jax.experimental.pallas import tpu as pltpu

_EPS = 1e-5  # PyTorch GroupNorm default eps


def _make_kernel(*, B, Cin, H, W, Hp, Wp, k1, k2, dil, G, Cout):
    """One grid step processes B images.

    Ref shapes:
      w1_ref : (G, Cin*k1*k2) SMEM   spatial conv weight, col = c*k1*k2 + ki*k2 + kj
      g1_ref : (G,)           SMEM   GroupNorm(G, G) gamma
      b1_ref : (G,)           SMEM   GroupNorm(G, G) beta
      x_ref  : (Cin*B, Hp*Wp) VMEM   padded input, row = c*B + b, flattened (Hp, Wp)
      w2_ref : (Cout, G)      VMEM   1x1 conv weight
      g2_ref : (Cout, 1)      VMEM   GroupNorm(G, Cout) gamma
      b2_ref : (Cout, 1)      VMEM   GroupNorm(G, Cout) beta
      o_ref  : (B, Cout, H*W) VMEM   output
    """
    HW = H * W
    Lacc = (H - 1) * Wp + W          # padded-flat length covering all valid outputs
    Cg = Cout // G
    KK = k1 * k2
    inv_hw = 1.0 / float(HW)
    inv_ghw = 1.0 / float(Cg * HW)

    def kernel(w1_ref, g1_ref, b1_ref, x_ref, w2_ref, g2_ref, b2_ref, o_ref):
        # ---------------- hoisted, batch-invariant values ----------------
        g2c = g2_ref[...]                                        # (Cout, 1)
        b2c = b2_ref[...]                                        # (Cout, 1)
        # 1x1-conv weight columns, pre-broadcast to lane width once per step.
        w2cols = [jnp.broadcast_to(w2_ref[:, g:g + 1], (Cout, HW)) for g in range(G)]
        rows = lax.broadcasted_iota(jnp.int32, (Cout, 1), 0)
        gmasks = [((rows >= g * Cg) & (rows < (g + 1) * Cg)).astype(jnp.float32)
                  for g in range(G)]

        # -------- stage 1: spatial conv, all B images at once, padded layout --------
        # acc[g][b, r*Wp + w] = conv output of image b, channel g, pixel (r, w).
        # Tap operand = one static lane slice of the flat padded image; the weight
        # is a scalar splat from SMEM, so the FMA stays a pure full-sublane VPU op.
        accs = [jnp.zeros((B, Lacc), jnp.float32) for _ in range(G)]
        for c in range(Cin):
            xc = x_ref[c * B:(c + 1) * B, :]                     # (B, Hp*Wp)
            for ki in range(k1):
                for kj in range(k2):
                    shift = ki * dil * Wp + kj * dil
                    win = xc[:, shift:shift + Lacc]              # (B, Lacc)
                    col = c * KK + ki * k2 + kj
                    for g in range(G):
                        accs[g] = accs[g] + w1_ref[g, col] * win

        # ---- compact valid region once per group, GroupNorm(G, G) + ReLU ----
        y1 = []
        for g in range(G):
            yg = jnp.concatenate(
                [accs[g][:, r * Wp:r * Wp + W] for r in range(H)], axis=1)  # (B, HW)
            mu = jnp.sum(yg, axis=1, keepdims=True) * inv_hw                # (B, 1)
            d = yg - mu
            var = jnp.sum(d * d, axis=1, keepdims=True) * inv_hw            # (B, 1)
            scale = lax.rsqrt(var + _EPS) * g1_ref[g]
            y1.append(jnp.maximum(d * scale + b1_ref[g], 0.0))              # (B, HW)

        # -------- stage 2: 1x1 conv + GroupNorm(G, Cout) + ReLU (per image) --------
        # Cout rows already fill the sublane axis; stats use per-row lane reductions
        # plus tiny (Cout,1) group combines (two-pass variance).
        for b in range(B):
            z = jnp.zeros((Cout, HW), jnp.float32)
            for g in range(G):
                z = z + w2cols[g] * y1[g][b:b + 1, :]

            s1 = jnp.sum(z, axis=1, keepdims=True)                          # (Cout, 1)
            mu = jnp.zeros((Cout, 1), jnp.float32)
            for g in range(G):
                mu = mu + gmasks[g] * (jnp.sum(s1 * gmasks[g]) * inv_ghw)
            d = z - mu
            s2 = jnp.sum(d * d, axis=1, keepdims=True)                      # (Cout, 1)
            var = jnp.zeros((Cout, 1), jnp.float32)
            for g in range(G):
                var = var + gmasks[g] * (jnp.sum(s2 * gmasks[g]) * inv_ghw)
            scale = lax.rsqrt(var + _EPS) * g2c
            # lane-dense (Cout, 256) unmasked store per image
            o_ref[b] = jnp.maximum(d * scale + b2c, 0.0).astype(o_ref.dtype)

    return kernel


def _pick_batch_block(N, *, per_image_bytes, vmem_budget=8 * 1024 * 1024,
                      max_block=16):
    """Pick how many images to process per grid step.

    Large enough to fill the sublane axis and amortize the ~0.35us per-step
    overhead, small enough for double-buffered blocks to fit the VMEM budget
    (v7x: 64 MiB physical), and preferring >= 2 grid steps so the 'parallel'
    batch axis can be sharded across v7x's two TensorCores.
    """
    cap = max(1, min(max_block, vmem_budget // max(1, 2 * per_image_bytes)))
    divisors = [d for d in range(1, N + 1) if N % d == 0]
    candidates = [d for d in divisors if d <= cap] or [min(divisors)]
    best = max(candidates)
    two_step = [d for d in candidates if N // d >= 2]
    if two_step and max(two_step) >= min(4, best):
        best = max(two_step)
    return best


def separable_conv2d(x, w1, g1, b1, w2, g2, b2, *, dilation=1, num_groups=1,
                     batch_block=None):
    """x: NCHW float32. Returns NCHW float32."""
    N, Cin, H, W = x.shape
    G, Cin_w, k1, k2 = w1.shape
    Cout = w2.shape[0]
    assert G == num_groups and Cin_w == Cin and Cout % G == 0

    # PyTorch padding='same' (extra pad on the bottom/right).
    ph = dilation * (k1 - 1)
    pw = dilation * (k2 - 1)
    Hp, Wp = H + ph, W + pw
    HW = H * W

    per_image_bytes = (Cin * Hp * Wp + Cout * HW) * 4
    B = (_pick_batch_block(N, per_image_bytes=per_image_bytes)
         if batch_block is None else batch_block)
    assert N % B == 0
    S = N // B

    xpad = jnp.pad(
        x.astype(jnp.float32),
        ((0, 0), (0, 0), (ph // 2, ph - ph // 2), (pw // 2, pw - pw // 2)),
    )
    # (S, Cin*B, Hp*Wp): channel-major inside each step block so channel c is a
    # contiguous (B, Hp*Wp) sublane slab in the kernel.  No im2col HBM blowup.
    x_blk = (xpad.reshape(S, B, Cin, Hp * Wp)
                 .transpose(0, 2, 1, 3)
                 .reshape(S, Cin * B, Hp * Wp))

    w1f = w1.reshape(G, Cin * k1 * k2).astype(jnp.float32)   # col = c*k1*k2+ki*k2+kj
    w2f = w2.reshape(Cout, G).astype(jnp.float32)

    kernel = _make_kernel(B=B, Cin=Cin, H=H, W=W, Hp=Hp, Wp=Wp,
                          k1=k1, k2=k2, dil=dilation, G=G, Cout=Cout)

    # Explicit VMEM budget (double-buffered in/out blocks + headroom); stays well
    # under v7x's 64 MiB physical VMEM and v5e/v6e's 128 MiB.
    block_bytes = (Cin * B * Hp * Wp + B * Cout * HW) * 4
    vmem_limit = int(min(48 * 1024 * 1024,
                         max(32 * 1024 * 1024, 4 * block_bytes)))

    out = pl.pallas_call(
        kernel,
        out_shape=jax.ShapeDtypeStruct((N, Cout, HW), jnp.float32),
        grid=(S,),
        in_specs=[
            pl.BlockSpec(memory_space=pltpu.MemorySpace.SMEM),              # w1
            pl.BlockSpec(memory_space=pltpu.MemorySpace.SMEM),              # g1
            pl.BlockSpec(memory_space=pltpu.MemorySpace.SMEM),              # b1
            pl.BlockSpec((None, Cin * B, Hp * Wp), lambda n: (n, 0, 0)),    # x
            pl.BlockSpec((Cout, G), lambda n: (0, 0)),                      # w2
            pl.BlockSpec((Cout, 1), lambda n: (0, 0)),                      # g2
            pl.BlockSpec((Cout, 1), lambda n: (0, 0)),                      # b2
        ],
        out_specs=pl.BlockSpec((B, Cout, HW), lambda n: (n, 0, 0)),
        compiler_params=pltpu.CompilerParams(
            dimension_semantics=("parallel",),
            vmem_limit_bytes=vmem_limit),
    )(
        w1f,
        g1.astype(jnp.float32),
        b1.astype(jnp.float32),
        x_blk,
        w2f,
        g2.reshape(Cout, 1).astype(jnp.float32),
        b2.reshape(Cout, 1).astype(jnp.float32),
    )
    return out.reshape(N, Cout, H, W)


# ---------------- pure-JAX reference (for correctness check) ----------------
def _group_norm_ref(x, num_groups, gamma, beta, eps=_EPS):
    N, C, H, W = x.shape
    xg = x.reshape(N, num_groups, C // num_groups, H, W)
    mu = xg.mean(axis=(2, 3, 4), keepdims=True)
    var = xg.var(axis=(2, 3, 4), keepdims=True)  # biased, as in PyTorch
    xn = ((xg - mu) / jnp.sqrt(var + eps)).reshape(N, C, H, W)
    return xn * gamma[None, :, None, None] + beta[None, :, None, None]


def _reference(x, w1, g1, b1, w2, g2, b2, dilation, num_groups):
    k1, k2 = w1.shape[2], w1.shape[3]
    pads = []
    for k in (k1, k2):
        total = dilation * (k - 1)
        pads.append((total // 2, total - total // 2))
    y = lax.conv_general_dilated(
        x, w1, (1, 1), pads, rhs_dilation=(dilation, dilation),
        dimension_numbers=("NCHW", "OIHW", "NCHW"),
        precision=lax.Precision.HIGHEST,
    )
    y = jnp.maximum(_group_norm_ref(y, num_groups, g1, b1), 0.0)
    z = lax.conv_general_dilated(
        y, w2, (1, 1), [(0, 0), (0, 0)],
        dimension_numbers=("NCHW", "OIHW", "NCHW"),
        precision=lax.Precision.HIGHEST,
    )
    return jnp.maximum(_group_norm_ref(z, num_groups, g2, b2), 0.0)


if __name__ == "__main__":
    def run_case(key, *, N, Cin, Cout, G, k1, k2, dil, H, W, batch_block=None):
        ks = jax.random.split(key, 7)
        x = jax.random.normal(ks[0], (N, Cin, H, W), jnp.float32)
        w1 = 0.2 * jax.random.normal(ks[1], (G, Cin, k1, k2), jnp.float32)
        g1 = 1.0 + 0.1 * jax.random.normal(ks[2], (G,), jnp.float32)
        b1 = 0.1 * jax.random.normal(ks[3], (G,), jnp.float32)
        w2 = 0.5 * jax.random.normal(ks[4], (Cout, G, 1, 1), jnp.float32)
        g2 = 1.0 + 0.1 * jax.random.normal(ks[5], (Cout,), jnp.float32)
        b2 = 0.1 * jax.random.normal(ks[6], (Cout,), jnp.float32)

        out = separable_conv2d(x, w1, g1, b1, w2, g2, b2, dilation=dil,
                               num_groups=G, batch_block=batch_block)
        out = jax.block_until_ready(out)
        ref = _reference(x, w1, g1, b1, w2, g2, b2, dil, G)
        assert out.shape == (N, Cout, H, W)
        err = float(jnp.max(jnp.abs(out - ref)))
        assert jnp.allclose(out, ref, atol=1e-3, rtol=1e-3), f"max abs err {err}"

    kA, kB, kC = jax.random.split(jax.random.PRNGKey(0), 3)

    # SeparableConv2d(4, 8, 3, 3, dilation_rate=1, groupsGN=2), batch 2
    run_case(kA, N=2, Cin=4, Cout=8, G=2, k1=3, k2=3, dil=1, H=16, W=16)

    # batch 8 -> auto batch block of 4 images/step, two "parallel" grid steps
    run_case(kB, N=8, Cin=4, Cout=8, G=2, k1=3, k2=3, dil=1, H=16, W=16)

    # asymmetric kernel + dilation, odd channel counts
    run_case(kC, N=2, Cin=3, Cout=6, G=2, k1=3, k2=5, dil=2, H=16, W=16)

    print("KERNEL_OK")
</pallas_src>

<mosaic_0001>
module attributes {stable_mosaic.version = 11 : i64} {
  func.func @kernel(%arg0: i32, %arg1: memref<2x36xf32, #tpu.memory_space<smem>>, %arg2: memref<2xf32, #tpu.memory_space<smem>>, %arg3: memref<2xf32, #tpu.memory_space<smem>>, %arg4: memref<1x8x324xf32, #tpu.memory_space<vmem>>, %arg5: memref<8x2xf32, #tpu.memory_space<vmem>>, %arg6: memref<8x1xf32, #tpu.memory_space<vmem>>, %arg7: memref<8x1xf32, #tpu.memory_space<vmem>>, %arg8: memref<2x8x256xf32, #tpu.memory_space<vmem>>) attributes {dimension_semantics = [#tpu.dimension_semantics<parallel>], iteration_bounds = array<i64: 1>, scalar_prefetch = 0 : i64, scratch_operands = 0 : i64, tpu.core_type = #tpu.core_type<tc>, window_params = [{transform_indices = @transform_0, window_bounds = array<i64: 2, 36>}, {transform_indices = @transform_1, window_bounds = array<i64: 2>}, {transform_indices = @transform_2, window_bounds = array<i64: 2>}, {transform_indices = @transform_3, window_bounds = array<i64: 1, 8, 324>}, {pipeline_mode = #tpu.pipeline_mode<synchronous>, transform_indices = @transform_4, window_bounds = array<i64: 8, 2>}, {pipeline_mode = #tpu.pipeline_mode<synchronous>, transform_indices = @transform_5, window_bounds = array<i64: 8, 1>}, {pipeline_mode = #tpu.pipeline_mode<synchronous>, transform_indices = @transform_6, window_bounds = array<i64: 8, 1>}, {transform_indices = @transform_7, window_bounds = array<i64: 2, 8, 256>}]} {
    %c0 = arith.constant 0 : index
    %c0_0 = arith.constant 0 : index
    %0 = vector.load %arg6[%c0, %c0_0] : memref<8x1xf32, #tpu.memory_space<vmem>>, vector<8x1xf32>
    %c0_1 = arith.constant 0 : index
    %c0_2 = arith.constant 0 : index
    %1 = vector.load %arg7[%c0_1, %c0_2] : memref<8x1xf32, #tpu.memory_space<vmem>>, vector<8x1xf32>
    %c0_3 = arith.constant 0 : index
    %c0_4 = arith.constant 0 : index
    %2 = vector.load %arg5[%c0_3, %c0_4] : memref<8x2xf32, #tpu.memory_space<vmem>>, vector<8x1xf32>
    %3 = vector.shape_cast %2 : vector<8x1xf32> to vector<8x1xf32>
    %4 = vector.broadcast %3 : vector<8x1xf32> to vector<8x256xf32>
    %c0_5 = arith.constant 0 : index
    %c1 = arith.constant 1 : index
    %5 = vector.load %arg5[%c0_5, %c1] : memref<8x2xf32, #tpu.memory_space<vmem>>, vector<8x1xf32>
    %6 = vector.shape_cast %5 : vector<8x1xf32> to vector<8x1xf32>
    %7 = vector.broadcast %6 : vector<8x1xf32> to vector<8x256xf32>
    %8 = tpu.iota {dimensions = array<i32: 0>} : vector<8x1xi32>
    %c0_i32 = arith.constant 0 : i32
    %9 = vector.broadcast %c0_i32 : i32 to vector<8x1xi32>
    %10 = arith.cmpi sge, %8, %9 : vector<8x1xi32>
    %c4_i32 = arith.constant 4 : i32
    %11 = vector.broadcast %c4_i32 : i32 to vector<8x1xi32>
    %12 = arith.cmpi slt, %8, %11 : vector<8x1xi32>
    %13 = arith.andi %10, %12 : vector<8x1xi1>
    %14 = arith.extui %13 : vector<8x1xi1> to vector<8x1xi32>
    %15 = arith.sitofp %14 : vector<8x1xi32> to vector<8x1xf32>
    %c4_i32_6 = arith.constant 4 : i32
    %16 = vector.broadcast %c4_i32_6 : i32 to vector<8x1xi32>
    %17 = arith.cmpi sge, %8, %16 : vector<8x1xi32>
    %c8_i32 = arith.constant 8 : i32
    %18 = vector.broadcast %c8_i32 : i32 to vector<8x1xi32>
    %19 = arith.cmpi slt, %8, %18 : vector<8x1xi32>
    %20 = arith.andi %17, %19 : vector<8x1xi1>
    %21 = arith.extui %20 : vector<8x1xi1> to vector<8x1xi32>
    %22 = arith.sitofp %21 : vector<8x1xi32> to vector<8x1xf32>
    %cst = arith.constant 0.000000e+00 : f32
    %23 = vector.broadcast %cst : f32 to vector<2x286xf32>
    %cst_7 = arith.constant 0.000000e+00 : f32
    %24 = vector.broadcast %cst_7 : f32 to vector<2x286xf32>
    %c0_8 = arith.constant 0 : index
    %c0_9 = arith.constant 0 : index
    %c0_10 = arith.constant 0 : index
    %25 = vector.load %arg4[%c0_8, %c0_9, %c0_10] : memref<1x8x324xf32, #tpu.memory_space<vmem>>, vector<1x2x324xf32>
    %26 = vector.shape_cast %25 : vector<1x2x324xf32> to vector<2x324xf32>
    %27 = vector.extract_strided_slice %26 {offsets = [0, 0], sizes = [2, 286], strides = [1, 1]} : vector<2x324xf32> to vector<2x286xf32>
    %c0_11 = arith.constant 0 : index
    %c0_12 = arith.constant 0 : index
    %28 = memref.load %arg1[%c0_11, %c0_12] : memref<2x36xf32, #tpu.memory_space<smem>>
    %29 = vector.broadcast %28 : f32 to vector<2x286xf32>
    %30 = arith.mulf %29, %27 : vector<2x286xf32>
    %31 = arith.addf %23, %30 : vector<2x286xf32>
    %c1_13 = arith.constant 1 : index
    %c0_14 = arith.constant 0 : index
    %32 = memref.load %arg1[%c1_13, %c0_14] : memref<2x36xf32, #tpu.memory_space<smem>>
    %33 = vector.broadcast %32 : f32 to vector<2x286xf32>
    %34 = arith.mulf %33, %27 : vector<2x286xf32>
    %35 = arith.addf %24, %34 : vector<2x286xf32>
    %36 = vector.extract_strided_slice %26 {offsets = [0, 1], sizes = [2, 286], strides = [1, 1]} : vector<2x324xf32> to vector<2x286xf32>
    %c0_15 = arith.constant 0 : index
    %c1_16 = arith.constant 1 : index
    %37 = memref.load %arg1[%c0_15, %c1_16] : memref<2x36xf32, #tpu.memory_space<smem>>
    %38 = vector.broadcast %37 : f32 to vector<2x286xf32>
    %39 = arith.mulf %38, %36 : vector<2x286xf32>
    %40 = arith.addf %31, %39 : vector<2x286xf32>
    %c1_17 = arith.constant 1 : index
    %c1_18 = arith.constant 1 : index
    %41 = memref.load %arg1[%c1_17, %c1_18] : memref<2x36xf32, #tpu.memory_space<smem>>
    %42 = vector.broadcast %41 : f32 to vector<2x286xf32>
    %43 = arith.mulf %42, %36 : vector<2x286xf32>
    %44 = arith.addf %35, %43 : vector<2x286xf32>
    %45 = vector.extract_strided_slice %26 {offsets = [0, 2], sizes = [2, 286], strides = [1, 1]} : vector<2x324xf32> to vector<2x286xf32>
    %c0_19 = arith.constant 0 : index
    %c2 = arith.constant 2 : index
    %46 = memref.load %arg1[%c0_19, %c2] : memref<2x36xf32, #tpu.memory_space<smem>>
    %47 = vector.broadcast %46 : f32 to vector<2x286xf32>
    %48 = arith.mulf %47, %45 : vector<2x286xf32>
    %49 = arith.addf %40, %48 : vector<2x286xf32>
    %c1_20 = arith.constant 1 : index
    %c2_21 = arith.constant 2 : index
    %50 = memref.load %arg1[%c1_20, %c2_21] : memref<2x36xf32, #tpu.memory_space<smem>>
    %51 = vector.broadcast %50 : f32 to vector<2x286xf32>
    %52 = arith.mulf %51, %45 : vector<2x286xf32>
    %53 = arith.addf %44, %52 : vector<2x286xf32>
    %54 = vector.extract_strided_slice %26 {offsets = [0, 18], sizes = [2, 286], strides = [1, 1]} : vector<2x324xf32> to vector<2x286xf32>
    %c0_22 = arith.constant 0 : index
    %c3 = arith.constant 3 : index
    %55 = memref.load %arg1[%c0_22, %c3] : memref<2x36xf32, #tpu.memory_space<smem>>
    %56 = vector.broadcast %55 : f32 to vector<2x286xf32>
    %57 = arith.mulf %56, %54 : vector<2x286xf32>
    %58 = arith.addf %49, %57 : vector<2x286xf32>
    %c1_23 = arith.constant 1 : index
    %c3_24 = arith.constant 3 : index
    %59 = memref.load %arg1[%c1_23, %c3_24] : memref<2x36xf32, #tpu.memory_space<smem>>
    %60 = vector.broadcast %59 : f32 to vector<2x286xf32>
    %61 = arith.mulf %60, %54 : vector<2x286xf32>
    %62 = arith.addf %53, %61 : vector<2x286xf32>
    %63 = vector.extract_strided_slice %26 {offsets = [0, 19], sizes = [2, 286], strides = [1, 1]} : vector<2x324xf32> to vector<2x286xf32>
    %c0_25 = arith.constant 0 : index
    %c4 = arith.constant 4 : index
    %64 = memref.load %arg1[%c0_25, %c4] : memref<2x36xf32, #tpu.memory_space<smem>>
    %65 = vector.broadcast %64 : f32 to vector<2x286xf32>
    %66 = arith.mulf %65, %63 : vector<2x286xf32>
    %67 = arith.addf %58, %66 : vector<2x286xf32>
    %c1_26 = arith.constant 1 : index
    %c4_27 = arith.constant 4 : index
    %68 = memref.load %arg1[%c1_26, %c4_27] : memref<2x36xf32, #tpu.memory_space<smem>>
    %69 = vector.broadcast %68 : f32 to vector<2x286xf32>
    %70 = arith.mulf %69, %63 : vector<2x286xf32>
    %71 = arith.addf %62, %70 : vector<2x286xf32>
    %72 = vector.extract_strided_slice %26 {offsets = [0, 20], sizes = [2, 286], strides = [1, 1]} : vector<2x324xf32> to vector<2x286xf32>
    %c0_28 = arith.constant 0 : index
    %c5 = arith.constant 5 : index
    %73 = memref.load %arg1[%c0_28, %c5] : memref<2x36xf32, #tpu.memory_space<smem>>
    %74 = vector.broadcast %73 : f32 to vector<2x286xf32>
    %75 = arith.mulf %74, %72 : vector<2x286xf32>
    %76 = arith.addf %67, %75 : vector<2x286xf32>
    %c1_29 = arith.constant 1 : index
    %c5_30 = arith.constant 5 : index
    %77 = memref.load %arg1[%c1_29, %c5_30] : memref<2x36xf32, #tpu.memory_space<smem>>
    %78 = vector.broadcast %77 : f32 to vector<2x286xf32>
    %79 = arith.mulf %78, %72 : vector<2x286xf32>
    %80 = arith.addf %71, %79 : vector<2x286xf32>
    %81 = vector.extract_strided_slice %26 {offsets = [0, 36], sizes = [2, 286], strides = [1, 1]} : vector<2x324xf32> to vector<2x286xf32>
    %c0_31 = arith.constant 0 : index
    %c6 = arith.constant 6 : index
    %82 = memref.load %arg1[%c0_31, %c6] : memref<2x36xf32, #tpu.memory_space<smem>>
    %83 = vector.broadcast %82 : f32 to vector<2x286xf32>
    %84 = arith.mulf %83, %81 : vector<2x286xf32>
    %85 = arith.addf %76, %84 : vector<2x286xf32>
    %c1_32 = arith.constant 1 : index
    %c6_33 = arith.constant 6 : index
    %86 = memref.load %arg1[%c1_32, %c6_33] : memref<2x36xf32, #tpu.memory_space<smem>>
    %87 = vector.broadcast %86 : f32 to vector<2x286xf32>
    %88 = arith.mulf %87, %81 : vector<2x286xf32>
    %89 = arith.addf %80, %88 : vector<2x286xf32>
    %90 = vector.extract_strided_slice %26 {offsets = [0, 37], sizes = [2, 286], strides = [1, 1]} : vector<2x324xf32> to vector<2x286xf32>
    %c0_34 = arith.constant 0 : index
    %c7 = arith.constant 7 : index
    %91 = memref.load %arg1[%c0_34, %c7] : memref<2x36xf32, #tpu.memory_space<smem>>
    %92 = vector.broadcast %91 : f32 to vector<2x286xf32>
    %93 = arith.mulf %92, %90 : vector<2x286xf32>
    %94 = arith.addf %85, %93 : vector<2x286xf32>
    %c1_35 = arith.constant 1 : index
    %c7_36 = arith.constant 7 : index
    %95 = memref.load %arg1[%c1_35, %c7_36] : memref<2x36xf32, #tpu.memory_space<smem>>
    %96 = vector.broadcast %95 : f32 to vector<2x286xf32>
    %97 = arith.mulf %96, %90 : vector<2x286xf32>
    %98 = arith.addf %89, %97 : vector<2x286xf32>
    %99 = vector.extract_strided_slice %26 {offsets = [0, 38], sizes = [2, 286], strides = [1, 1]} : vector<2x324xf32> to vector<2x286xf32>
    %c0_37 = arith.constant 0 : index
    %c8 = arith.constant 8 : index
    %100 = memref.load %arg1[%c0_37, %c8] : memref<2x36xf32, #tpu.memory_space<smem>>
    %101 = vector.broadcast %100 : f32 to vector<2x286xf32>
    %102 = arith.mulf %101, %99 : vector<2x286xf32>
    %103 = arith.addf %94, %102 : vector<2x286xf32>
    %c1_38 = arith.constant 1 : index
    %c8_39 = arith.constant 8 : index
    %104 = memref.load %arg1[%c1_38, %c8_39] : memref<2x36xf32, #tpu.memory_space<smem>>
    %105 = vector.broadcast %104 : f32 to vector<2x286xf32>
    %106 = arith.mulf %105, %99 : vector<2x286xf32>
    %107 = arith.addf %98, %106 : vector<2x286xf32>
    %c0_40 = arith.constant 0 : index
    %c2_41 = arith.constant 2 : index
    %c0_42 = arith.constant 0 : index
    %108 = vector.load %arg4[%c0_40, %c2_41, %c0_42] : memref<1x8x324xf32, #tpu.memory_space<vmem>>, vector<1x2x324xf32>
    %109 = vector.shape_cast %108 : vector<1x2x324xf32> to vector<2x324xf32>
    %110 = vector.extract_strided_slice %109 {offsets = [0, 0], sizes = [2, 286], strides = [1, 1]} : vector<2x324xf32> to vector<2x286xf32>
    %c0_43 = arith.constant 0 : index
    %c9 = arith.constant 9 : index
    %111 = memref.load %arg1[%c0_43, %c9] : memref<2x36xf32, #tpu.memory_space<smem>>
    %112 = vector.broadcast %111 : f32 to vector<2x286xf32>
    %113 = arith.mulf %112, %110 : vector<2x286xf32>
    %114 = arith.addf %103, %113 : vector<2x286xf32>
    %c1_44 = arith.constant 1 : index
    %c9_45 = arith.constant 9 : index
    %115 = memref.load %arg1[%c1_44, %c9_45] : memref<2x36xf32, #tpu.memory_space<smem>>
    %116 = vector.broadcast %115 : f32 to vector<2x286xf32>
    %117 = arith.mulf %116, %110 : vector<2x286xf32>
    %118 = arith.addf %107, %117 : vector<2x286xf32>
    %119 = vector.extract_strided_slice %109 {offsets = [0, 1], sizes = [2, 286], strides = [1, 1]} : vector<2x324xf32> to vector<2x286xf32>
    %c0_46 = arith.constant 0 : index
    %c10 = arith.constant 10 : index
    %120 = memref.load %arg1[%c0_46, %c10] : memref<2x36xf32, #tpu.memory_space<smem>>
    %121 = vector.broadcast %120 : f32 to vector<2x286xf32>
    %122 = arith.mulf %121, %119 : vector<2x286xf32>
    %123 = arith.addf %114, %122 : vector<2x286xf32>
    %c1_47 = arith.constant 1 : index
    %c10_48 = arith.constant 10 : index
    %124 = memref.load %arg1[%c1_47, %c10_48] : memref<2x36xf32, #tpu.memory_space<smem>>
    %125 = vector.broadcast %124 : f32 to vector<2x286xf32>
    %126 = arith.mulf %125, %119 : vector<2x286xf32>
    %127 = arith.addf %118, %126 : vector<2x286xf32>
    %128 = vector.extract_strided_slice %109 {offsets = [0, 2], sizes = [2, 286], strides = [1, 1]} : vector<2x324xf32> to vector<2x286xf32>
    %c0_49 = arith.constant 0 : index
    %c11 = arith.constant 11 : index
    %129 = memref.load %arg1[%c0_49, %c11] : memref<2x36xf32, #tpu.memory_space<smem>>
    %130 = vector.broadcast %129 : f32 to vector<2x286xf32>
    %131 = arith.mulf %130, %128 : vector<2x286xf32>
    %132 = arith.addf %123, %131 : vector<2x286xf32>
    %c1_50 = arith.constant 1 : index
    %c11_51 = arith.constant 11 : index
    %133 = memref.load %arg1[%c1_50, %c11_51] : memref<2x36xf32, #tpu.memory_space<smem>>
    %134 = vector.broadcast %133 : f32 to vector<2x286xf32>
    %135 = arith.mulf %134, %128 : vector<2x286xf32>
    %136 = arith.addf %127, %135 : vector<2x286xf32>
    %137 = vector.extract_strided_slice %109 {offsets = [0, 18], sizes = [2, 286], strides = [1, 1]} : vector<2x324xf32> to vector<2x286xf32>
    %c0_52 = arith.constant 0 : index
    %c12 = arith.constant 12 : index
    %138 = memref.load %arg1[%c0_52, %c12] : memref<2x36xf32, #tpu.memory_space<smem>>
    %139 = vector.broadcast %138 : f32 to vector<2x286xf32>
    %140 = arith.mulf %139, %137 : vector<2x286xf32>
    %141 = arith.addf %132, %140 : vector<2x286xf32>
    %c1_53 = arith.constant 1 : index
    %c12_54 = arith.constant 12 : index
    %142 = memref.load %arg1[%c1_53, %c12_54] : memref<2x36xf32, #tpu.memory_space<smem>>
    %143 = vector.broadcast %142 : f32 to vector<2x286xf32>
    %144 = arith.mulf %143, %137 : vector<2x286xf32>
    %145 = arith.addf %136, %144 : vector<2x286xf32>
    %146 = vector.extract_strided_slice %109 {offsets = [0, 19], sizes = [2, 286], strides = [1, 1]} : vector<2x324xf32> to vector<2x286xf32>
    %c0_55 = arith.constant 0 : index
    %c13 = arith.constant 13 : index
    %147 = memref.load %arg1[%c0_55, %c13] : memref<2x36xf32, #tpu.memory_space<smem>>
    %148 = vector.broadcast %147 : f32 to vector<2x286xf32>
    %149 = arith.mulf %148, %146 : vector<2x286xf32>
    %150 = arith.addf %141, %149 : vector<2x286xf32>
    %c1_56 = arith.constant 1 : index
    %c13_57 = arith.constant 13 : index
    %151 = memref.load %arg1[%c1_56, %c13_57] : memref<2x36xf32, #tpu.memory_space<smem>>
    %152 = vector.broadcast %151 : f32 to vector<2x286xf32>
    %153 = arith.mulf %152, %146 : vector<2x286xf32>
    %154 = arith.addf %145, %153 : vector<2x286xf32>
    %155 = vector.extract_strided_slice %109 {offsets = [0, 20], sizes = [2, 286], strides = [1, 1]} : vector<2x324xf32> to vector<2x286xf32>
    %c0_58 = arith.constant 0 : index
    %c14 = arith.constant 14 : index
    %156 = memref.load %arg1[%c0_58, %c14] : memref<2x36xf32, #tpu.memory_space<smem>>
    %157 = vector.broadcast %156 : f32 to vector<2x286xf32>
    %158 = arith.mulf %157, %155 : vector<2x286xf32>
    %159 = arith.addf %150, %158 : vector<2x286xf32>
    %c1_59 = arith.constant 1 : index
    %c14_60 = arith.constant 14 : index
    %160 = memref.load %arg1[%c1_59, %c14_60] : memref<2x36xf32, #tpu.memory_space<smem>>
    %161 = vector.broadcast %160 : f32 to vector<2x286xf32>
    %162 = arith.mulf %161, %155 : vector<2x286xf32>
    %163 = arith.addf %154, %162 : vector<2x286xf32>
    %164 = vector.extract_strided_slice %109 {offsets = [0, 36], sizes = [2, 286], strides = [1, 1]} : vector<2x324xf32> to vector<2x286xf32>
    %c0_61 = arith.constant 0 : index
    %c15 = arith.constant 15 : index
    %165 = memref.load %arg1[%c0_61, %c15] : memref<2x36xf32, #tpu.memory_space<smem>>
    %166 = vector.broadcast %165 : f32 to vector<2x286xf32>
    %167 = arith.mulf %166, %164 : vector<2x286xf32>
    %168 = arith.addf %159, %167 : vector<2x286xf32>
    %c1_62 = arith.constant 1 : index
    %c15_63 = arith.constant 15 : index
    %169 = memref.load %arg1[%c1_62, %c15_63] : memref<2x36xf32, #tpu.memory_space<smem>>
    %170 = vector.broadcast %169 : f32 to vector<2x286xf32>
    %171 = arith.mulf %170, %164 : vector<2x286xf32>
    %172 = arith.addf %163, %171 : vector<2x286xf32>
    %173 = vector.extract_strided_slice %109 {offsets = [0, 37], sizes = [2, 286], strides = [1, 1]} : vector<2x324xf32> to vector<2x286xf32>
    %c0_64 = arith.constant 0 : index
    %c16 = arith.constant 16 : index
    %174 = memref.load %arg1[%c0_64, %c16] : memref<2x36xf32, #tpu.memory_space<smem>>
    %175 = vector.broadcast %174 : f32 to vector<2x286xf32>
    %176 = arith.mulf %175, %173 : vector<2x286xf32>
    %177 = arith.addf %168, %176 : vector<2x286xf32>
    %c1_65 = arith.constant 1 : index
    %c16_66 = arith.constant 16 : index
    %178 = memref.load %arg1[%c1_65, %c16_66] : memref<2x36xf32, #tpu.memory_space<smem>>
    %179 = vector.broadcast %178 : f32 to vector<2x286xf32>
    %180 = arith.mulf %179, %173 : vector<2x286xf32>
    %181 = arith.addf %172, %180 : vector<2x286xf32>
    %182 = vector.extract_strided_slice %109 {offsets = [0, 38], sizes = [2, 286], strides = [1, 1]} : vector<2x324xf32> to vector<2x286xf32>
    %c0_67 = arith.constant 0 : index
    %c17 = arith.constant 17 : index
    %183 = memref.load %arg1[%c0_67, %c17] : memref<2x36xf32, #tpu.memory_space<smem>>
    %184 = vector.broadcast %183 : f32 to vector<2x286xf32>
    %185 = arith.mulf %184, %182 : vector<2x286xf32>
    %186 = arith.addf %177, %185 : vector<2x286xf32>
    %c1_68 = arith.constant 1 : index
    %c17_69 = arith.constant 17 : index
    %187 = memref.load %arg1[%c1_68, %c17_69] : memref<2x36xf32, #tpu.memory_space<smem>>
    %188 = vector.broadcast %187 : f32 to vector<2x286xf32>
    %189 = arith.mulf %188, %182 : vector<2x286xf32>
    %190 = arith.addf %181, %189 : vector<2x286xf32>
    %c0_70 = arith.constant 0 : index
    %c4_71 = arith.constant 4 : index
    %c0_72 = arith.constant 0 : index
    %191 = vector.load %arg4[%c0_70, %c4_71, %c0_72] : memref<1x8x324xf32, #tpu.memory_space<vmem>>, vector<1x2x324xf32>
    %192 = vector.shape_cast %191 : vector<1x2x324xf32> to vector<2x324xf32>
    %193 = vector.extract_strided_slice %192 {offsets = [0, 0], sizes = [2, 286], strides = [1, 1]} : vector<2x324xf32> to vector<2x286xf32>
    %c0_73 = arith.constant 0 : index
    %c18 = arith.constant 18 : index
    %194 = memref.load %arg1[%c0_73, %c18] : memref<2x36xf32, #tpu.memory_space<smem>>
    %195 = vector.broadcast %194 : f32 to vector<2x286xf32>
    %196 = arith.mulf %195, %193 : vector<2x286xf32>
    %197 = arith.addf %186, %196 : vector<2x286xf32>
    %c1_74 = arith.constant 1 : index
    %c18_75 = arith.constant 18 : index
    %198 = memref.load %arg1[%c1_74, %c18_75] : memref<2x36xf32, #tpu.memory_space<smem>>
    %199 = vector.broadcast %198 : f32 to vector<2x286xf32>
    %200 = arith.mulf %199, %193 : vector<2x286xf32>
    %201 = arith.addf %190, %200 : vector<2x286xf32>
    %202 = vector.extract_strided_slice %192 {offsets = [0, 1], sizes = [2, 286], strides = [1, 1]} : vector<2x324xf32> to vector<2x286xf32>
    %c0_76 = arith.constant 0 : index
    %c19 = arith.constant 19 : index
    %203 = memref.load %arg1[%c0_76, %c19] : memref<2x36xf32, #tpu.memory_space<smem>>
    %204 = vector.broadcast %203 : f32 to vector<2x286xf32>
    %205 = arith.mulf %204, %202 : vector<2x286xf32>
    %206 = arith.addf %197, %205 : vector<2x286xf32>
    %c1_77 = arith.constant 1 : index
    %c19_78 = arith.constant 19 : index
    %207 = memref.load %arg1[%c1_77, %c19_78] : memref<2x36xf32, #tpu.memory_space<smem>>
    %208 = vector.broadcast %207 : f32 to vector<2x286xf32>
    %209 = arith.mulf %208, %202 : vector<2x286xf32>
    %210 = arith.addf %201, %209 : vector<2x286xf32>
    %211 = vector.extract_strided_slice %192 {offsets = [0, 2], sizes = [2, 286], strides = [1, 1]} : vector<2x324xf32> to vector<2x286xf32>
    %c0_79 = arith.constant 0 : index
    %c20 = arith.constant 20 : index
    %212 = memref.load %arg1[%c0_79, %c20] : memref<2x36xf32, #tpu.memory_space<smem>>
    %213 = vector.broadcast %212 : f32 to vector<2x286xf32>
    %214 = arith.mulf %213, %211 : vector<2x286xf32>
    %215 = arith.addf %206, %214 : vector<2x286xf32>
    %c1_80 = arith.constant 1 : index
    %c20_81 = arith.constant 20 : index
    %216 = memref.load %arg1[%c1_80, %c20_81] : memref<2x36xf32, #tpu.memory_space<smem>>
    %217 = vector.broadcast %216 : f32 to vector<2x286xf32>
    %218 = arith.mulf %217, %211 : vector<2x286xf32>
    %219 = arith.addf %210, %218 : vector<2x286xf32>
    %220 = vector.extract_strided_slice %192 {offsets = [0, 18], sizes = [2, 286], strides = [1, 1]} : vector<2x324xf32> to vector<2x286xf32>
    %c0_82 = arith.constant 0 : index
    %c21 = arith.constant 21 : index
    %221 = memref.load %arg1[%c0_82, %c21] : memref<2x36xf32, #tpu.memory_space<smem>>
    %222 = vector.broadcast %221 : f32 to vector<2x286xf32>
    %223 = arith.mulf %222, %220 : vector<2x286xf32>
    %224 = arith.addf %215, %223 : vector<2x286xf32>
    %c1_83 = arith.constant 1 : index
    %c21_84 = arith.constant 21 : index
    %225 = memref.load %arg1[%c1_83, %c21_84] : memref<2x36xf32, #tpu.memory_space<smem>>
    %226 = vector.broadcast %225 : f32 to vector<2x286xf32>
    %227 = arith.mulf %226, %220 : vector<2x286xf32>
    %228 = arith.addf %219, %227 : vector<2x286xf32>
    %229 = vector.extract_strided_slice %192 {offsets = [0, 19], sizes = [2, 286], strides = [1, 1]} : vector<2x324xf32> to vector<2x286xf32>
    %c0_85 = arith.constant 0 : index
    %c22 = arith.constant 22 : index
    %230 = memref.load %arg1[%c0_85, %c22] : memref<2x36xf32, #tpu.memory_space<smem>>
    %231 = vector.broadcast %230 : f32 to vector<2x286xf32>
    %232 = arith.mulf %231, %229 : vector<2x286xf32>
    %233 = arith.addf %224, %232 : vector<2x286xf32>
    %c1_86 = arith.constant 1 : index
    %c22_87 = arith.constant 22 : index
    %234 = memref.load %arg1[%c1_86, %c22_87] : memref<2x36xf32, #tpu.memory_space<smem>>
    %235 = vector.broadcast %234 : f32 to vector<2x286xf32>
    %236 = arith.mulf %235, %229 : vector<2x286xf32>
    %237 = arith.addf %228, %236 : vector<2x286xf32>
    %238 = vector.extract_strided_slice %192 {offsets = [0, 20], sizes = [2, 286], strides = [1, 1]} : vector<2x324xf32> to vector<2x286xf32>
    %c0_88 = arith.constant 0 : index
    %c23 = arith.constant 23 : index
    %239 = memref.load %arg1[%c0_88, %c23] : memref<2x36xf32, #tpu.memory_space<smem>>
    %240 = vector.broadcast %239 : f32 to vector<2x286xf32>
    %241 = arith.mulf %240, %238 : vector<2x286xf32>
    %242 = arith.addf %233, %241 : vector<2x286xf32>
    %c1_89 = arith.constant 1 : index
    %c23_90 = arith.constant 23 : index
    %243 = memref.load %arg1[%c1_89, %c23_90] : memref<2x36xf32, #tpu.memory_space<smem>>
    %244 = vector.broadcast %243 : f32 to vector<2x286xf32>
    %245 = arith.mulf %244, %238 : vector<2x286xf32>
    %246 = arith.addf %237, %245 : vector<2x286xf32>
    %247 = vector.extract_strided_slice %192 {offsets = [0, 36], sizes = [2, 286], strides = [1, 1]} : vector<2x324xf32> to vector<2x286xf32>
    %c0_91 = arith.constant 0 : index
    %c24 = arith.constant 24 : index
    %248 = memref.load %arg1[%c0_91, %c24] : memref<2x36xf32, #tpu.memory_space<smem>>
    %249 = vector.broadcast %248 : f32 to vector<2x286xf32>
    %250 = arith.mulf %249, %247 : vector<2x286xf32>
    %251 = arith.addf %242, %250 : vector<2x286xf32>
    %c1_92 = arith.constant 1 : index
    %c24_93 = arith.constant 24 : index
    %252 = memref.load %arg1[%c1_92, %c24_93] : memref<2x36xf32, #tpu.memory_space<smem>>
    %253 = vector.broadcast %252 : f32 to vector<2x286xf32>
    %254 = arith.mulf %253, %247 : vector<2x286xf32>
    %255 = arith.addf %246, %254 : vector<2x286xf32>
    %256 = vector.extract_strided_slice %192 {offsets = [0, 37], sizes = [2, 286], strides = [1, 1]} : vector<2x324xf32> to vector<2x286xf32>
    %c0_94 = arith.constant 0 : index
    %c25 = arith.constant 25 : index
    %257 = memref.load %arg1[%c0_94, %c25] : memref<2x36xf32, #tpu.memory_space<smem>>
    %258 = vector.broadcast %257 : f32 to vector<2x286xf32>
    %259 = arith.mulf %258, %256 : vector<2x286xf32>
    %260 = arith.addf %251, %259 : vector<2x286xf32>
    %c1_95 = arith.constant 1 : index
    %c25_96 = arith.constant 25 : index
    %261 = memref.load %arg1[%c1_95, %c25_96] : memref<2x36xf32, #tpu.memory_space<smem>>
    %262 = vector.broadcast %261 : f32 to vector<2x286xf32>
    %263 = arith.mulf %262, %256 : vector<2x286xf32>
    %264 = arith.addf %255, %263 : vector<2x286xf32>
    %265 = vector.extract_strided_slice %192 {offsets = [0, 38], sizes = [2, 286], strides = [1, 1]} : vector<2x324xf32> to vector<2x286xf32>
    %c0_97 = arith.constant 0 : index
    %c26 = arith.constant 26 : index
    %266 = memref.load %arg1[%c0_97, %c26] : memref<2x36xf32, #tpu.memory_space<smem>>
    %267 = vector.broadcast %266 : f32 to vector<2x286xf32>
    %268 = arith.mulf %267, %265 : vector<2x286xf32>
    %269 = arith.addf %260, %268 : vector<2x286xf32>
    %c1_98 = arith.constant 1 : index
    %c26_99 = arith.constant 26 : index
    %270 = memref.load %arg1[%c1_98, %c26_99] : memref<2x36xf32, #tpu.memory_space<smem>>
    %271 = vector.broadcast %270 : f32 to vector<2x286xf32>
    %272 = arith.mulf %271, %265 : vector<2x286xf32>
    %273 = arith.addf %264, %272 : vector<2x286xf32>
    %c0_100 = arith.constant 0 : index
    %c6_101 = arith.constant 6 : index
    %c0_102 = arith.constant 0 : index
    %274 = vector.load %arg4[%c0_100, %c6_101, %c0_102] : memref<1x8x324xf32, #tpu.memory_space<vmem>>, vector<1x2x324xf32>
    %275 = vector.shape_cast %274 : vector<1x2x324xf32> to vector<2x324xf32>
    %276 = vector.extract_strided_slice %275 {offsets = [0, 0], sizes = [2, 286], strides = [1, 1]} : vector<2x324xf32> to vector<2x286xf32>
    %c0_103 = arith.constant 0 : index
    %c27 = arith.constant 27 : index
    %277 = memref.load %arg1[%c0_103, %c27] : memref<2x36xf32, #tpu.memory_space<smem>>
    %278 = vector.broadcast %277 : f32 to vector<2x286xf32>
    %279 = arith.mulf %278, %276 : vector<2x286xf32>
    %280 = arith.addf %269, %279 : vector<2x286xf32>
    %c1_104 = arith.constant 1 : index
    %c27_105 = arith.constant 27 : index
    %281 = memref.load %arg1[%c1_104, %c27_105] : memref<2x36xf32, #tpu.memory_space<smem>>
    %282 = vector.broadcast %281 : f32 to vector<2x286xf32>
    %283 = arith.mulf %282, %276 : vector<2x286xf32>
    %284 = arith.addf %273, %283 : vector<2x286xf32>
    %285 = vector.extract_strided_slice %275 {offsets = [0, 1], sizes = [2, 286], strides = [1, 1]} : vector<2x324xf32> to vector<2x286xf32>
    %c0_106 = arith.constant 0 : index
    %c28 = arith.constant 28 : index
    %286 = memref.load %arg1[%c0_106, %c28] : memref<2x36xf32, #tpu.memory_space<smem>>
    %287 = vector.broadcast %286 : f32 to vector<2x286xf32>
    %288 = arith.mulf %287, %285 : vector<2x286xf32>
    %289 = arith.addf %280, %288 : vector<2x286xf32>
    %c1_107 = arith.constant 1 : index
    %c28_108 = arith.constant 28 : index
    %290 = memref.load %arg1[%c1_107, %c28_108] : memref<2x36xf32, #tpu.memory_space<smem>>
    %291 = vector.broadcast %290 : f32 to vector<2x286xf32>
    %292 = arith.mulf %291, %285 : vector<2x286xf32>
    %293 = arith.addf %284, %292 : vector<2x286xf32>
    %294 = vector.extract_strided_slice %275 {offsets = [0, 2], sizes = [2, 286], strides = [1, 1]} : vector<2x324xf32> to vector<2x286xf32>
    %c0_109 = arith.constant 0 : index
    %c29 = arith.constant 29 : index
    %295 = memref.load %arg1[%c0_109, %c29] : memref<2x36xf32, #tpu.memory_space<smem>>
    %296 = vector.broadcast %295 : f32 to vector<2x286xf32>
    %297 = arith.mulf %296, %294 : vector<2x286xf32>
    %298 = arith.addf %289, %297 : vector<2x286xf32>
    %c1_110 = arith.constant 1 : index
    %c29_111 = arith.constant 29 : index
    %299 = memref.load %arg1[%c1_110, %c29_111] : memref<2x36xf32, #tpu.memory_space<smem>>
    %300 = vector.broadcast %299 : f32 to vector<2x286xf32>
    %301 = arith.mulf %300, %294 : vector<2x286xf32>
    %302 = arith.addf %293, %301 : vector<2x286xf32>
    %303 = vector.extract_strided_slice %275 {offsets = [0, 18], sizes = [2, 286], strides = [1, 1]} : vector<2x324xf32> to vector<2x286xf32>
    %c0_112 = arith.constant 0 : index
    %c30 = arith.constant 30 : index
    %304 = memref.load %arg1[%c0_112, %c30] : memref<2x36xf32, #tpu.memory_space<smem>>
    %305 = vector.broadcast %304 : f32 to vector<2x286xf32>
    %306 = arith.mulf %305, %303 : vector<2x286xf32>
    %307 = arith.addf %298, %306 : vector<2x286xf32>
    %c1_113 = arith.constant 1 : index
    %c30_114 = arith.constant 30 : index
    %308 = memref.load %arg1[%c1_113, %c30_114] : memref<2x36xf32, #tpu.memory_space<smem>>
    %309 = vector.broadcast %308 : f32 to vector<2x286xf32>
    %310 = arith.mulf %309, %303 : vector<2x286xf32>
    %311 = arith.addf %302, %310 : vector<2x286xf32>
    %312 = vector.extract_strided_slice %275 {offsets = [0, 19], sizes = [2, 286], strides = [1, 1]} : vector<2x324xf32> to vector<2x286xf32>
    %c0_115 = arith.constant 0 : index
    %c31 = arith.constant 31 : index
    %313 = memref.load %arg1[%c0_115, %c31] : memref<2x36xf32, #tpu.memory_space<smem>>
    %314 = vector.broadcast %313 : f32 to vector<2x286xf32>
    %315 = arith.mulf %314, %312 : vector<2x286xf32>
    %316 = arith.addf %307, %315 : vector<2x286xf32>
    %c1_116 = arith.constant 1 : index
    %c31_117 = arith.constant 31 : index
    %317 = memref.load %arg1[%c1_116, %c31_117] : memref<2x36xf32, #tpu.memory_space<smem>>
    %318 = vector.broadcast %317 : f32 to vector<2x286xf32>
    %319 = arith.mulf %318, %312 : vector<2x286xf32>
    %320 = arith.addf %311, %319 : vector<2x286xf32>
    %321 = vector.extract_strided_slice %275 {offsets = [0, 20], sizes = [2, 286], strides = [1, 1]} : vector<2x324xf32> to vector<2x286xf32>
    %c0_118 = arith.constant 0 : index
    %c32 = arith.constant 32 : index
    %322 = memref.load %arg1[%c0_118, %c32] : memref<2x36xf32, #tpu.memory_space<smem>>
    %323 = vector.broadcast %322 : f32 to vector<2x286xf32>
    %324 = arith.mulf %323, %321 : vector<2x286xf32>
    %325 = arith.addf %316, %324 : vector<2x286xf32>
    %c1_119 = arith.constant 1 : index
    %c32_120 = arith.constant 32 : index
    %326 = memref.load %arg1[%c1_119, %c32_120] : memref<2x36xf32, #tpu.memory_space<smem>>
    %327 = vector.broadcast %326 : f32 to vector<2x286xf32>
    %328 = arith.mulf %327, %321 : vector<2x286xf32>
    %329 = arith.addf %320, %328 : vector<2x286xf32>
    %330 = vector.extract_strided_slice %275 {offsets = [0, 36], sizes = [2, 286], strides = [1, 1]} : vector<2x324xf32> to vector<2x286xf32>
    %c0_121 = arith.constant 0 : index
    %c33 = arith.constant 33 : index
    %331 = memref.load %arg1[%c0_121, %c33] : memref<2x36xf32, #tpu.memory_space<smem>>
    %332 = vector.broadcast %331 : f32 to vector<2x286xf32>
    %333 = arith.mulf %332, %330 : vector<2x286xf32>
    %334 = arith.addf %325, %333 : vector<2x286xf32>
    %c1_122 = arith.constant 1 : index
    %c33_123 = arith.constant 33 : index
    %335 = memref.load %arg1[%c1_122, %c33_123] : memref<2x36xf32, #tpu.memory_space<smem>>
    %336 = vector.broadcast %335 : f32 to vector<2x286xf32>
    %337 = arith.mulf %336, %330 : vector<2x286xf32>
    %338 = arith.addf %329, %337 : vector<2x286xf32>
    %339 = vector.extract_strided_slice %275 {offsets = [0, 37], sizes = [2, 286], strides = [1, 1]} : vector<2x324xf32> to vector<2x286xf32>
    %c0_124 = arith.constant 0 : index
    %c34 = arith.constant 34 : index
    %340 = memref.load %arg1[%c0_124, %c34] : memref<2x36xf32, #tpu.memory_space<smem>>
    %341 = vector.broadcast %340 : f32 to vector<2x286xf32>
    %342 = arith.mulf %341, %339 : vector<2x286xf32>
    %343 = arith.addf %334, %342 : vector<2x286xf32>
    %c1_125 = arith.constant 1 : index
    %c34_126 = arith.constant 34 : index
    %344 = memref.load %arg1[%c1_125, %c34_126] : memref<2x36xf32, #tpu.memory_space<smem>>
    %345 = vector.broadcast %344 : f32 to vector<2x286xf32>
    %346 = arith.mulf %345, %339 : vector<2x286xf32>
    %347 = arith.addf %338, %346 : vector<2x286xf32>
    %348 = vector.extract_strided_slice %275 {offsets = [0, 38], sizes = [2, 286], strides = [1, 1]} : vector<2x324xf32> to vector<2x286xf32>
    %c0_127 = arith.constant 0 : index
    %c35 = arith.constant 35 : index
    %349 = memref.load %arg1[%c0_127, %c35] : memref<2x36xf32, #tpu.memory_space<smem>>
    %350 = vector.broadcast %349 : f32 to vector<2x286xf32>
    %351 = arith.mulf %350, %348 : vector<2x286xf32>
    %352 = arith.addf %343, %351 : vector<2x286xf32>
    %c1_128 = arith.constant 1 : index
    %c35_129 = arith.constant 35 : index
    %353 = memref.load %arg1[%c1_128, %c35_129] : memref<2x36xf32, #tpu.memory_space<smem>>
    %354 = vector.broadcast %353 : f32 to vector<2x286xf32>
    %355 = arith.mulf %354, %348 : vector<2x286xf32>
    %356 = arith.addf %347, %355 : vector<2x286xf32>
    %357 = vector.extract_strided_slice %352 {offsets = [0, 0], sizes = [2, 16], strides = [1, 1]} : vector<2x286xf32> to vector<2x16xf32>
    %358 = vector.extract_strided_slice %352 {offsets = [0, 18], sizes = [2, 16], strides = [1, 1]} : vector<2x286xf32> to vector<2x16xf32>
    %359 = vector.extract_strided_slice %352 {offsets = [0, 36], sizes = [2, 16], strides = [1, 1]} : vector<2x286xf32> to vector<2x16xf32>
    %360 = vector.extract_strided_slice %352 {offsets = [0, 54], sizes = [2, 16], strides = [1, 1]} : vector<2x286xf32> to vector<2x16xf32>
    %361 = vector.extract_strided_slice %352 {offsets = [0, 72], sizes = [2, 16], strides = [1, 1]} : vector<2x286xf32> to vector<2x16xf32>
    %362 = vector.extract_strided_slice %352 {offsets = [0, 90], sizes = [2, 16], strides = [1, 1]} : vector<2x286xf32> to vector<2x16xf32>
    %363 = vector.extract_strided_slice %352 {offsets = [0, 108], sizes = [2, 16], strides = [1, 1]} : vector<2x286xf32> to vector<2x16xf32>
    %364 = vector.extract_strided_slice %352 {offsets = [0, 126], sizes = [2, 16], strides = [1, 1]} : vector<2x286xf32> to vector<2x16xf32>
    %365 = vector.extract_strided_slice %352 {offsets = [0, 144], sizes = [2, 16], strides = [1, 1]} : vector<2x286xf32> to vector<2x16xf32>
    %366 = vector.extract_strided_slice %352 {offsets = [0, 162], sizes = [2, 16], strides = [1, 1]} : vector<2x286xf32> to vector<2x16xf32>
    %367 = vector.extract_strided_slice %352 {offsets = [0, 180], sizes = [2, 16], strides = [1, 1]} : vector<2x286xf32> to vector<2x16xf32>
    %368 = vector.extract_strided_slice %352 {offsets = [0, 198], sizes = [2, 16], strides = [1, 1]} : vector<2x286xf32> to vector<2x16xf32>
    %369 = vector.extract_strided_slice %352 {offsets = [0, 216], sizes = [2, 16], strides = [1, 1]} : vector<2x286xf32> to vector<2x16xf32>
    %370 = vector.extract_strided_slice %352 {offsets = [0, 234], sizes = [2, 16], strides = [1, 1]} : vector<2x286xf32> to vector<2x16xf32>
    %371 = vector.extract_strided_slice %352 {offsets = [0, 252], sizes = [2, 16], strides = [1, 1]} : vector<2x286xf32> to vector<2x16xf32>
    %372 = vector.extract_strided_slice %352 {offsets = [0, 270], sizes = [2, 16], strides = [1, 1]} : vector<2x286xf32> to vector<2x16xf32>
    %373 = tpu.concatenate %357, %358, %359, %360, %361, %362, %363, %364, %365, %366, %367, %368, %369, %370, %371, %372 in 1 : vector<2x16xf32>, vector<2x16xf32>, vector<2x16xf32>, vector<2x16xf32>, vector<2x16xf32>, vector<2x16xf32>, vector<2x16xf32>, vector<2x16xf32>, vector<2x16xf32>, vector<2x16xf32>, vector<2x16xf32>, vector<2x16xf32>, vector<2x16xf32>, vector<2x16xf32>, vector<2x16xf32>, vector<2x16xf32> -> vector<2x256xf32>
    %cst_130 = arith.constant dense<0.000000e+00> : vector<2xf32>
    %374 = vector.multi_reduction <add>, %373, %cst_130 [1] : vector<2x256xf32> to vector<2xf32>
    %375 = vector.shape_cast %374 : vector<2xf32> to vector<2x1xf32>
    %cst_131 = arith.constant 3.906250e-03 : f32
    %376 = vector.broadcast %cst_131 : f32 to vector<2x1xf32>
    %377 = arith.mulf %375, %376 : vector<2x1xf32>
    %378 = vector.broadcast %377 : vector<2x1xf32> to vector<2x256xf32>
    %379 = arith.subf %373, %378 : vector<2x256xf32>
    %380 = arith.mulf %379, %379 : vector<2x256xf32>
    %cst_132 = arith.constant dense<0.000000e+00> : vector<2xf32>
    %381 = vector.multi_reduction <add>, %380, %cst_132 [1] : vector<2x256xf32> to vector<2xf32>
    %382 = vector.shape_cast %381 : vector<2xf32> to vector<2x1xf32>
    %cst_133 = arith.constant 3.906250e-03 : f32
    %383 = vector.broadcast %cst_133 : f32 to vector<2x1xf32>
    %384 = arith.mulf %382, %383 : vector<2x1xf32>
    %cst_134 = arith.constant 9.99999974E-6 : f32
    %385 = vector.broadcast %cst_134 : f32 to vector<2x1xf32>
    %386 = arith.addf %384, %385 : vector<2x1xf32>
    %387 = math.rsqrt %386 : vector<2x1xf32>
    %c0_135 = arith.constant 0 : index
    %388 = memref.load %arg2[%c0_135] : memref<2xf32, #tpu.memory_space<smem>>
    %389 = vector.broadcast %388 : f32 to vector<2x1xf32>
    %390 = arith.mulf %387, %389 : vector<2x1xf32>
    %391 = vector.broadcast %390 : vector<2x1xf32> to vector<2x256xf32>
    %392 = arith.mulf %379, %391 : vector<2x256xf32>
    %c0_136 = arith.constant 0 : index
    %393 = memref.load %arg3[%c0_136] : memref<2xf32, #tpu.memory_space<smem>>
    %394 = vector.broadcast %393 : f32 to vector<2x256xf32>
    %395 = arith.addf %392, %394 : vector<2x256xf32>
    %cst_137 = arith.constant 0.000000e+00 : f32
    %396 = vector.broadcast %cst_137 : f32 to vector<2x256xf32>
    %397 = arith.maximumf %395, %396 : vector<2x256xf32>
    %398 = vector.extract_strided_slice %356 {offsets = [0, 0], sizes = [2, 16], strides = [1, 1]} : vector<2x286xf32> to vector<2x16xf32>
    %399 = vector.extract_strided_slice %356 {offsets = [0, 18], sizes = [2, 16], strides = [1, 1]} : vector<2x286xf32> to vector<2x16xf32>
    %400 = vector.extract_strided_slice %356 {offsets = [0, 36], sizes = [2, 16], strides = [1, 1]} : vector<2x286xf32> to vector<2x16xf32>
    %401 = vector.extract_strided_slice %356 {offsets = [0, 54], sizes = [2, 16], strides = [1, 1]} : vector<2x286xf32> to vector<2x16xf32>
    %402 = vector.extract_strided_slice %356 {offsets = [0, 72], sizes = [2, 16], strides = [1, 1]} : vector<2x286xf32> to vector<2x16xf32>
    %403 = vector.extract_strided_slice %356 {offsets = [0, 90], sizes = [2, 16], strides = [1, 1]} : vector<2x286xf32> to vector<2x16xf32>
    %404 = vector.extract_strided_slice %356 {offsets = [0, 108], sizes = [2, 16], strides = [1, 1]} : vector<2x286xf32> to vector<2x16xf32>
    %405 = vector.extract_strided_slice %356 {offsets = [0, 126], sizes = [2, 16], strides = [1, 1]} : vector<2x286xf32> to vector<2x16xf32>
    %406 = vector.extract_strided_slice %356 {offsets = [0, 144], sizes = [2, 16], strides = [1, 1]} : vector<2x286xf32> to vector<2x16xf32>
    %407 = vector.extract_strided_slice %356 {offsets = [0, 162], sizes = [2, 16], strides = [1, 1]} : vector<2x286xf32> to vector<2x16xf32>
    %408 = vector.extract_strided_slice %356 {offsets = [0, 180], sizes = [2, 16], strides = [1, 1]} : vector<2x286xf32> to vector<2x16xf32>
    %409 = vector.extract_strided_slice %356 {offsets = [0, 198], sizes = [2, 16], strides = [1, 1]} : vector<2x286xf32> to vector<2x16xf32>
    %410 = vector.extract_strided_slice %356 {offsets = [0, 216], sizes = [2, 16], strides = [1, 1]} : vector<2x286xf32> to vector<2x16xf32>
    %411 = vector.extract_strided_slice %356 {offsets = [0, 234], sizes = [2, 16], strides = [1, 1]} : vector<2x286xf32> to vector<2x16xf32>
    %412 = vector.extract_strided_slice %356 {offsets = [0, 252], sizes = [2, 16], strides = [1, 1]} : vector<2x286xf32> to vector<2x16xf32>
    %413 = vector.extract_strided_slice %356 {offsets = [0, 270], sizes = [2, 16], strides = [1, 1]} : vector<2x286xf32> to vector<2x16xf32>
    %414 = tpu.concatenate %398, %399, %400, %401, %402, %403, %404, %405, %406, %407, %408, %409, %410, %411, %412, %413 in 1 : vector<2x16xf32>, vector<2x16xf32>, vector<2x16xf32>, vector<2x16xf32>, vector<2x16xf32>, vector<2x16xf32>, vector<2x16xf32>, vector<2x16xf32>, vector<2x16xf32>, vector<2x16xf32>, vector<2x16xf32>, vector<2x16xf32>, vector<2x16xf32>, vector<2x16xf32>, vector<2x16xf32>, vector<2x16xf32> -> vector<2x256xf32>
    %cst_138 = arith.constant dense<0.000000e+00> : vector<2xf32>
    %415 = vector.multi_reduction <add>, %414, %cst_138 [1] : vector<2x256xf32> to vector<2xf32>
    %416 = vector.shape_cast %415 : vector<2xf32> to vector<2x1xf32>
    %cst_139 = arith.constant 3.906250e-03 : f32
    %417 = vector.broadcast %cst_139 : f32 to vector<2x1xf32>
    %418 = arith.mulf %416, %417 : vector<2x1xf32>
    %419 = vector.broadcast %418 : vector<2x1xf32> to vector<2x256xf32>
    %420 = arith.subf %414, %419 : vector<2x256xf32>
    %421 = arith.mulf %420, %420 : vector<2x256xf32>
    %cst_140 = arith.constant dense<0.000000e+00> : vector<2xf32>
    %422 = vector.multi_reduction <add>, %421, %cst_140 [1] : vector<2x256xf32> to vector<2xf32>
    %423 = vector.shape_cast %422 : vector<2xf32> to vector<2x1xf32>
    %cst_141 = arith.constant 3.906250e-03 : f32
    %424 = vector.broadcast %cst_141 : f32 to vector<2x1xf32>
    %425 = arith.mulf %423, %424 : vector<2x1xf32>
    %cst_142 = arith.constant 9.99999974E-6 : f32
    %426 = vector.broadcast %cst_142 : f32 to vector<2x1xf32>
    %427 = arith.addf %425, %426 : vector<2x1xf32>
    %428 = math.rsqrt %427 : vector<2x1xf32>
    %c1_143 = arith.constant 1 : index
    %429 = memref.load %arg2[%c1_143] : memref<2xf32, #tpu.memory_space<smem>>
    %430 = vector.broadcast %429 : f32 to vector<2x1xf32>
    %431 = arith.mulf %428, %430 : vector<2x1xf32>
    %432 = vector.broadcast %431 : vector<2x1xf32> to vector<2x256xf32>
    %433 = arith.mulf %420, %432 : vector<2x256xf32>
    %c1_144 = arith.constant 1 : index
    %434 = memref.load %arg3[%c1_144] : memref<2xf32, #tpu.memory_space<smem>>
    %435 = vector.broadcast %434 : f32 to vector<2x256xf32>
    %436 = arith.addf %433, %435 : vector<2x256xf32>
    %cst_145 = arith.constant 0.000000e+00 : f32
    %437 = vector.broadcast %cst_145 : f32 to vector<2x256xf32>
    %438 = arith.maximumf %436, %437 : vector<2x256xf32>
    %cst_146 = arith.constant 0.000000e+00 : f32
    %439 = vector.broadcast %cst_146 : f32 to vector<8x256xf32>
    %440 = vector.extract_strided_slice %397 {offsets = [0, 0], sizes = [1, 256], strides = [1, 1]} : vector<2x256xf32> to vector<1x256xf32>
    %441 = vector.broadcast %440 : vector<1x256xf32> to vector<8x256xf32>
    %442 = arith.mulf %4, %441 : vector<8x256xf32>
    %443 = arith.addf %439, %442 : vector<8x256xf32>
    %444 = vector.extract_strided_slice %438 {offsets = [0, 0], sizes = [1, 256], strides = [1, 1]} : vector<2x256xf32> to vector<1x256xf32>
    %445 = vector.broadcast %444 : vector<1x256xf32> to vector<8x256xf32>
    %446 = arith.mulf %7, %445 : vector<8x256xf32>
    %447 = arith.addf %443, %446 : vector<8x256xf32>
    %cst_147 = arith.constant dense<0.000000e+00> : vector<8xf32>
    %448 = vector.multi_reduction <add>, %447, %cst_147 [1] : vector<8x256xf32> to vector<8xf32>
    %449 = vector.shape_cast %448 : vector<8xf32> to vector<8x1xf32>
    %cst_148 = arith.constant 0.000000e+00 : f32
    %450 = vector.broadcast %cst_148 : f32 to vector<8x1xf32>
    %451 = arith.mulf %449, %15 : vector<8x1xf32>
    %452 = vector.shape_cast %451 : vector<8x1xf32> to vector<1x8x1xf32>
    %cst_149 = arith.constant dense<0.000000e+00> : vector<1xf32>
    %453 = vector.multi_reduction <add>, %452, %cst_149 [1, 2] : vector<1x8x1xf32> to vector<1xf32>
    %454 = vector.shape_cast %453 : vector<1xf32> to vector<1x1x1xf32>
    %455 = vector.extract %454[0, 0, 0] : f32 from vector<1x1x1xf32>
    %cst_150 = arith.constant 9.765625E-4 : f32
    %456 = arith.mulf %455, %cst_150 : f32
    %457 = vector.broadcast %456 : f32 to vector<8x1xf32>
    %458 = arith.mulf %15, %457 : vector<8x1xf32>
    %459 = arith.addf %450, %458 : vector<8x1xf32>
    %460 = arith.mulf %449, %22 : vector<8x1xf32>
    %461 = vector.shape_cast %460 : vector<8x1xf32> to vector<1x8x1xf32>
    %cst_151 = arith.constant dense<0.000000e+00> : vector<1xf32>
    %462 = vector.multi_reduction <add>, %461, %cst_151 [1, 2] : vector<1x8x1xf32> to vector<1xf32>
    %463 = vector.shape_cast %462 : vector<1xf32> to vector<1x1x1xf32>
    %464 = vector.extract %463[0, 0, 0] : f32 from vector<1x1x1xf32>
    %cst_152 = arith.constant 9.765625E-4 : f32
    %465 = arith.mulf %464, %cst_152 : f32
    %466 = vector.broadcast %465 : f32 to vector<8x1xf32>
    %467 = arith.mulf %22, %466 : vector<8x1xf32>
    %468 = arith.addf %459, %467 : vector<8x1xf32>
    %469 = vector.broadcast %468 : vector<8x1xf32> to vector<8x256xf32>
    %470 = arith.subf %447, %469 : vector<8x256xf32>
    %471 = arith.mulf %470, %470 : vector<8x256xf32>
    %cst_153 = arith.constant dense<0.000000e+00> : vector<8xf32>
    %472 = vector.multi_reduction <add>, %471, %cst_153 [1] : vector<8x256xf32> to vector<8xf32>
    %473 = vector.shape_cast %472 : vector<8xf32> to vector<8x1xf32>
    %cst_154 = arith.constant 0.000000e+00 : f32
    %474 = vector.broadcast %cst_154 : f32 to vector<8x1xf32>
    %475 = arith.mulf %473, %15 : vector<8x1xf32>
    %476 = vector.shape_cast %475 : vector<8x1xf32> to vector<1x8x1xf32>
    %cst_155 = arith.constant dense<0.000000e+00> : vector<1xf32>
    %477 = vector.multi_reduction <add>, %476, %cst_155 [1, 2] : vector<1x8x1xf32> to vector<1xf32>
    %478 = vector.shape_cast %477 : vector<1xf32> to vector<1x1x1xf32>
    %479 = vector.extract %478[0, 0, 0] : f32 from vector<1x1x1xf32>
    %cst_156 = arith.constant 9.765625E-4 : f32
    %480 = arith.mulf %479, %cst_156 : f32
    %481 = vector.broadcast %480 : f32 to vector<8x1xf32>
    %482 = arith.mulf %15, %481 : vector<8x1xf32>
    %483 = arith.addf %474, %482 : vector<8x1xf32>
    %484 = arith.mulf %473, %22 : vector<8x1xf32>
    %485 = vector.shape_cast %484 : vector<8x1xf32> to vector<1x8x1xf32>
    %cst_157 = arith.constant dense<0.000000e+00> : vector<1xf32>
    %486 = vector.multi_reduction <add>, %485, %cst_157 [1, 2] : vector<1x8x1xf32> to vector<1xf32>
    %487 = vector.shape_cast %486 : vector<1xf32> to vector<1x1x1xf32>
    %488 = vector.extract %487[0, 0, 0] : f32 from vector<1x1x1xf32>
    %cst_158 = arith.constant 9.765625E-4 : f32
    %489 = arith.mulf %488, %cst_158 : f32
    %490 = vector.broadcast %489 : f32 to vector<8x1xf32>
    %491 = arith.mulf %22, %490 : vector<8x1xf32>
    %492 = arith.addf %483, %491 : vector<8x1xf32>
    %cst_159 = arith.constant 9.99999974E-6 : f32
    %493 = vector.broadcast %cst_159 : f32 to vector<8x1xf32>
    %494 = arith.addf %492, %493 : vector<8x1xf32>
    %495 = math.rsqrt %494 : vector<8x1xf32>
    %496 = arith.mulf %495, %0 : vector<8x1xf32>
    %497 = vector.broadcast %496 : vector<8x1xf32> to vector<8x256xf32>
    %498 = arith.mulf %470, %497 : vector<8x256xf32>
    %499 = vector.broadcast %1 : vector<8x1xf32> to vector<8x256xf32>
    %500 = arith.addf %498, %499 : vector<8x256xf32>
    %cst_160 = arith.constant 0.000000e+00 : f32
    %501 = vector.broadcast %cst_160 : f32 to vector<8x256xf32>
    %502 = arith.maximumf %500, %501 : vector<8x256xf32>
    %c0_161 = arith.constant 0 : index
    %c0_162 = arith.constant 0 : index
    %c0_163 = arith.constant 0 : index
    %503 = vector.load %arg8[%c0_161, %c0_162, %c0_163] : memref<2x8x256xf32, #tpu.memory_space<vmem>>, vector<1x8x256xf32>
    %504 = vector.shape_cast %503 : vector<1x8x256xf32> to vector<8x256xf32>
    %505 = vector.shape_cast %502 : vector<8x256xf32> to vector<1x8x256xf32>
    tpu.vector_store %arg8[%c0_161, %c0_162, %c0_163], %505 {strides = array<i32>} : memref<2x8x256xf32, #tpu.memory_space<vmem>>, vector<1x8x256xf32>,
    %cst_164 = arith.constant 0.000000e+00 : f32
    %506 = vector.broadcast %cst_164 : f32 to vector<8x256xf32>
    %507 = vector.extract_strided_slice %397 {offsets = [1, 0], sizes = [1, 256], strides = [1, 1]} : vector<2x256xf32> to vector<1x256xf32>
    %508 = vector.broadcast %507 : vector<1x256xf32> to vector<8x256xf32>
    %509 = arith.mulf %4, %508 : vector<8x256xf32>
    %510 = arith.addf %506, %509 : vector<8x256xf32>
    %511 = vector.extract_strided_slice %438 {offsets = [1, 0], sizes = [1, 256], strides = [1, 1]} : vector<2x256xf32> to vector<1x256xf32>
    %512 = vector.broadcast %511 : vector<1x256xf32> to vector<8x256xf32>
    %513 = arith.mulf %7, %512 : vector<8x256xf32>
    %514 = arith.addf %510, %513 : vector<8x256xf32>
    %cst_165 = arith.constant dense<0.000000e+00> : vector<8xf32>
    %515 = vector.multi_reduction <add>, %514, %cst_165 [1] : vector<8x256xf32> to vector<8xf32>
    %516 = vector.shape_cast %515 : vector<8xf32> to vector<8x1xf32>
    %cst_166 = arith.constant 0.000000e+00 : f32
    %517 = vector.broadcast %cst_166 : f32 to vector<8x1xf32>
    %518 = arith.mulf %516, %15 : vector<8x1xf32>
    %519 = vector.shape_cast %518 : vector<8x1xf32> to vector<1x8x1xf32>
    %cst_167 = arith.constant dense<0.000000e+00> : vector<1xf32>
    %520 = vector.multi_reduction <add>, %519, %cst_167 [1, 2] : vector<1x8x1xf32> to vector<1xf32>
    %521 = vector.shape_cast %520 : vector<1xf32> to vector<1x1x1xf32>
    %522 = vector.extract %521[0, 0, 0] : f32 from vector<1x1x1xf32>
    %cst_168 = arith.constant 9.765625E-4 : f32
    %523 = arith.mulf %522, %cst_168 : f32
    %524 = vector.broadcast %523 : f32 to vector<8x1xf32>
    %525 = arith.mulf %15, %524 : vector<8x1xf32>
    %526 = arith.addf %517, %525 : vector<8x1xf32>
    %527 = arith.mulf %516, %22 : vector<8x1xf32>
    %528 = vector.shape_cast %527 : vector<8x1xf32> to vector<1x8x1xf32>
    %cst_169 = arith.constant dense<0.000000e+00> : vector<1xf32>
    %529 = vector.multi_reduction <add>, %528, %cst_169 [1, 2] : vector<1x8x1xf32> to vector<1xf32>
    %530 = vector.shape_cast %529 : vector<1xf32> to vector<1x1x1xf32>
    %531 = vector.extract %530[0, 0, 0] : f32 from vector<1x1x1xf32>
    %cst_170 = arith.constant 9.765625E-4 : f32
    %532 = arith.mulf %531, %cst_170 : f32
    %533 = vector.broadcast %532 : f32 to vector<8x1xf32>
    %534 = arith.mulf %22, %533 : vector<8x1xf32>
    %535 = arith.addf %526, %534 : vector<8x1xf32>
    %536 = vector.broadcast %535 : vector<8x1xf32> to vector<8x256xf32>
    %537 = arith.subf %514, %536 : vector<8x256xf32>
    %538 = arith.mulf %537, %537 : vector<8x256xf32>
    %cst_171 = arith.constant dense<0.000000e+00> : vector<8xf32>
    %539 = vector.multi_reduction <add>, %538, %cst_171 [1] : vector<8x256xf32> to vector<8xf32>
    %540 = vector.shape_cast %539 : vector<8xf32> to vector<8x1xf32>
    %cst_172 = arith.constant 0.000000e+00 : f32
    %541 = vector.broadcast %cst_172 : f32 to vector<8x1xf32>
    %542 = arith.mulf %540, %15 : vector<8x1xf32>
    %543 = vector.shape_cast %542 : vector<8x1xf32> to vector<1x8x1xf32>
    %cst_173 = arith.constant dense<0.000000e+00> : vector<1xf32>
    %544 = vector.multi_reduction <add>, %543, %cst_173 [1, 2] : vector<1x8x1xf32> to vector<1xf32>
    %545 = vector.shape_cast %544 : vector<1xf32> to vector<1x1x1xf32>
    %546 = vector.extract %545[0, 0, 0] : f32 from vector<1x1x1xf32>
    %cst_174 = arith.constant 9.765625E-4 : f32
    %547 = arith.mulf %546, %cst_174 : f32
    %548 = vector.broadcast %547 : f32 to vector<8x1xf32>
    %549 = arith.mulf %15, %548 : vector<8x1xf32>
    %550 = arith.addf %541, %549 : vector<8x1xf32>
    %551 = arith.mulf %540, %22 : vector<8x1xf32>
    %552 = vector.shape_cast %551 : vector<8x1xf32> to vector<1x8x1xf32>
    %cst_175 = arith.constant dense<0.000000e+00> : vector<1xf32>
    %553 = vector.multi_reduction <add>, %552, %cst_175 [1, 2] : vector<1x8x1xf32> to vector<1xf32>
    %554 = vector.shape_cast %553 : vector<1xf32> to vector<1x1x1xf32>
    %555 = vector.extract %554[0, 0, 0] : f32 from vector<1x1x1xf32>
    %cst_176 = arith.constant 9.765625E-4 : f32
    %556 = arith.mulf %555, %cst_176 : f32
    %557 = vector.broadcast %556 : f32 to vector<8x1xf32>
    %558 = arith.mulf %22, %557 : vector<8x1xf32>
    %559 = arith.addf %550, %558 : vector<8x1xf32>
    %cst_177 = arith.constant 9.99999974E-6 : f32
    %560 = vector.broadcast %cst_177 : f32 to vector<8x1xf32>
    %561 = arith.addf %559, %560 : vector<8x1xf32>
    %562 = math.rsqrt %561 : vector<8x1xf32>
    %563 = arith.mulf %562, %0 : vector<8x1xf32>
    %564 = vector.broadcast %563 : vector<8x1xf32> to vector<8x256xf32>
    %565 = arith.mulf %537, %564 : vector<8x256xf32>
    %566 = vector.broadcast %1 : vector<8x1xf32> to vector<8x256xf32>
    %567 = arith.addf %565, %566 : vector<8x256xf32>
    %cst_178 = arith.constant 0.000000e+00 : f32
    %568 = vector.broadcast %cst_178 : f32 to vector<8x256xf32>
    %569 = arith.maximumf %567, %568 : vector<8x256xf32>
    %c1_179 = arith.constant 1 : index
    %c0_180 = arith.constant 0 : index
    %c0_181 = arith.constant 0 : index
    %570 = vector.load %arg8[%c1_179, %c0_180, %c0_181] : memref<2x8x256xf32, #tpu.memory_space<vmem>>, vector<1x8x256xf32>
    %571 = vector.shape_cast %570 : vector<1x8x256xf32> to vector<8x256xf32>
    %572 = vector.shape_cast %569 : vector<8x256xf32> to vector<1x8x256xf32>
    tpu.vector_store %arg8[%c1_179, %c0_180, %c0_181], %572 {strides = array<i32>} : memref<2x8x256xf32, #tpu.memory_space<vmem>>, vector<1x8x256xf32>,
    return
  }
  func.func @transform_0(%arg0: i32) -> (i32, i32) {
    %c0_i32 = arith.constant 0 : i32
    %c0_i32_0 = arith.constant 0 : i32
    %c0_i32_1 = arith.constant 0 : i32
    return %c0_i32, %c0_i32_0 : i32, i32
  }
  func.func @transform_1(%arg0: i32) -> i32 {
    %c0_i32 = arith.constant 0 : i32
    %c0_i32_0 = arith.constant 0 : i32
    return %c0_i32 : i32
  }
  func.func @transform_2(%arg0: i32) -> i32 {
    %c0_i32 = arith.constant 0 : i32
    %c0_i32_0 = arith.constant 0 : i32
    return %c0_i32 : i32
  }
  func.func @transform_3(%arg0: i32) -> (i32, i32, i32) {
    %c0_i32 = arith.constant 0 : i32
    %c0_i32_0 = arith.constant 0 : i32
    %c0_i32_1 = arith.constant 0 : i32
    return %arg0, %c0_i32, %c0_i32_0 : i32, i32, i32
  }
  func.func @transform_4(%arg0: i32) -> (i32, i32) {
    %c0_i32 = arith.constant 0 : i32
    %c0_i32_0 = arith.constant 0 : i32
    %c0_i32_1 = arith.constant 0 : i32
    return %c0_i32, %c0_i32_0 : i32, i32
  }
  func.func @transform_5(%arg0: i32) -> (i32, i32) {
    %c0_i32 = arith.constant 0 : i32
    %c0_i32_0 = arith.constant 0 : i32
    %c0_i32_1 = arith.constant 0 : i32
    return %c0_i32, %c0_i32_0 : i32, i32
  }
  func.func @transform_6(%arg0: i32) -> (i32, i32) {
    %c0_i32 = arith.constant 0 : i32
    %c0_i32_0 = arith.constant 0 : i32
    %c0_i32_1 = arith.constant 0 : i32
    return %c0_i32, %c0_i32_0 : i32, i32
  }
  func.func @transform_7(%arg0: i32) -> (i32, i32, i32) {
    %c0_i32 = arith.constant 0 : i32
    %c0_i32_0 = arith.constant 0 : i32
    %c0_i32_1 = arith.constant 0 : i32
    return %arg0, %c0_i32, %c0_i32_0 : i32, i32, i32
  }
}

</mosaic_0001>

<llo_original>
// kernel: tpu_custom_call.1
$region0: #{tpu_custom_call.1}
  #allocation0 [shape = 'u32[]', space=smem, size = 0x4, offset = 0x4, fixed_abs, tag = 'smem constant byte address 0x4 - core index']
  #allocation1 [shape = 'u32[144,128]{1,0:T(1,128)}', space=vmem, size = 0x12000, scoped, tag = 'internal scratch']
  %s0 = inlined_call_operand.vmem [shape: f32[2,36], index: 0, kind: input, shape index: {}]
  %s1 = inlined_call_operand.vmem [shape: f32[2], index: 1, kind: input, shape index: {}]
  %s2 = inlined_call_operand.vmem [shape: f32[2], index: 2, kind: input, shape index: {}]
  %s3 = inlined_call_operand.vmem [shape: f32[1,8,324], index: 3, kind: input, shape index: {}]
  %s4 = inlined_call_operand.vmem [shape: f32[8,2], index: 4, kind: input, shape index: {}]
  %s5 = inlined_call_operand.vmem [shape: f32[8,1], index: 5, kind: input, shape index: {}]
  %s6 = inlined_call_operand.vmem [shape: f32[8,1], index: 6, kind: input, shape index: {}]
  %s7 = inlined_call_operand.hbm [shape: f32[2,8,256], index: 7, kind: output, shape index: {}]
  %s8 = sld [smem:[#allocation0]]
  $region50: #{tpu_custom_call.1} parent=0
    _
  %s10 = ssub.s32 1, %s8
  %s11 = scalar_select 0, %s10, %s8
  $region1: #{tpu_custom_call.1} parent=0
    #allocation2 [shape = 'u8[1024]{0}', space=smem, size = 0x400, scoped, tag = 'input window, operand 0, single buffered']
    #allocation3 [shape = 's32[1]{0}', space=sflag, size = 0x4, scoped, tag = 'scoped memory for tpu_custom_call.1']
    #allocation4 [shape = 's32[1]{0}', space=sflag, size = 0x4, scoped, tag = 'scoped memory for tpu_custom_call.1']
    #allocation5 [shape = 'u8[512]{0}', space=smem, size = 0x200, scoped, tag = 'input window, operand 1, single buffered']
    #allocation6 [shape = 's32[1]{0}', space=sflag, size = 0x4, scoped, tag = 'scoped memory for tpu_custom_call.1']
    #allocation7 [shape = 'u8[512]{0}', space=smem, size = 0x200, scoped, tag = 'input window, operand 2, single buffered']
    #allocation8 [shape = 'u8[16384]{0}', space=vmem, size = 0x4000, scoped, tag = 'output window, operand 0, single buffered']
    %12 = vsyncpa [#allocation4], 0
    %13 = vsyncpa [#allocation6], 0
    %14 = vsyncpa [#allocation3], 0
    // Predicated region
    $region2: #{tpu_custom_call.1} parent=1 // pred_check
      _
    $region3: #{tpu_custom_call.1} parent=1 // pred_check_branch
      %16 = sbr.rel (0) target = $region5
    $region4: #{tpu_custom_call.1} parent=1 // pred_region
      %s18 = ssub.s32 32, 32
      %19 = vsyncadd [#allocation4], %s18
      %s21 = sshll.u32 %s0, 4
      %s22 = int_to_ptr.vmem [resolvable:$true] %s21
      %24 = dma.vmem_to_smem %s22, 32, [#allocation2], [#allocation4]
    $region5: #{tpu_custom_call.1} parent=1 // pred_fallthru
      _
    // Predicated region
    $region6: #{tpu_custom_call.1} parent=1 // pred_check
      _
    $region7: #{tpu_custom_call.1} parent=1 // pred_check_branch
      %26 = sbr.rel (0) target = $region9
    $region8: #{tpu_custom_call.1} parent=1 // pred_region
      %s28 = ssub.s32 16, 16
      %29 = vsyncadd [#allocation6], %s28
      %s31 = sshll.u32 %s1, 4
      %s32 = int_to_ptr.vmem [resolvable:$true] %s31
      %34 = dma.vmem_to_smem %s32, 16, [#allocation5], [#allocation6]
    $region9: #{tpu_custom_call.1} parent=1 // pred_fallthru
      _
    // Predicated region
    $region10: #{tpu_custom_call.1} parent=1 // pred_check
      _
    $region11: #{tpu_custom_call.1} parent=1 // pred_check_branch
      %36 = sbr.rel (0) target = $region13
    $region12: #{tpu_custom_call.1} parent=1 // pred_region
      %s38 = ssub.s32 16, 16
      %39 = vsyncadd [#allocation6], %s38
      %s41 = sshll.u32 %s2, 4
      %s42 = int_to_ptr.vmem [resolvable:$true] %s41
      %44 = dma.vmem_to_smem %s42, 16, [#allocation7], [#allocation6]
    $region13: #{tpu_custom_call.1} parent=1 // pred_fallthru
      _
    // Predicated region
    $region14: #{tpu_custom_call.1} parent=1 // pred_check
      _
    $region15: #{tpu_custom_call.1} parent=1 // pred_check_branch
      %46 = sbr.rel (0) target = $region17
    $region16: #{tpu_custom_call.1} parent=1 // pred_region
      _
    $region17: #{tpu_custom_call.1} parent=1 // pred_fallthru
      _
    // Predicated region
    $region18: #{tpu_custom_call.1} parent=1 // pred_check
      _
    $region19: #{tpu_custom_call.1} parent=1 // pred_check_branch
      %48 = sbr.rel (0) target = $region21
    $region20: #{tpu_custom_call.1} parent=1 // pred_region
      _
    $region21: #{tpu_custom_call.1} parent=1 // pred_fallthru
      _
    // Predicated region
    $region22: #{tpu_custom_call.1} parent=1 // pred_check
      _
    $region23: #{tpu_custom_call.1} parent=1 // pred_check_branch
      %50 = sbr.rel (0) target = $region25
    $region24: #{tpu_custom_call.1} parent=1 // pred_region
      _
    $region25: #{tpu_custom_call.1} parent=1 // pred_fallthru
      _
    // Predicated region
    $region26: #{tpu_custom_call.1} parent=1 // pred_check
      _
    $region27: #{tpu_custom_call.1} parent=1 // pred_check_branch
      %52 = sbr.rel (0) target = $region29
    $region28: #{tpu_custom_call.1} parent=1 // pred_region
      _
    $region29: #{tpu_custom_call.1} parent=1 // pred_fallthru
      _
    // Predicated region
    $region30: #{tpu_custom_call.1} parent=1 // pred_check
      _
    $region31: #{tpu_custom_call.1} parent=1 // pred_check_branch
      %54 = sbr.rel (0) target = $region33
    $region32: #{tpu_custom_call.1} parent=1 // pred_region
      %55 = dma.done [#allocation4], 32
    $region33: #{tpu_custom_call.1} parent=1 // pred_fallthru
      _
    // Predicated region
    $region34: #{tpu_custom_call.1} parent=1 // pred_check
      _
    $region35: #{tpu_custom_call.1} parent=1 // pred_check_branch
      %57 = sbr.rel (0) target = $region37
    $region36: #{tpu_custom_call.1} parent=1 // pred_region
      %58 = dma.done [#allocation6], 16
    $region37: #{tpu_custom_call.1} parent=1 // pred_fallthru
      _
    // Predicated region
    $region38: #{tpu_custom_call.1} parent=1 // pred_check
      _
    $region39: #{tpu_custom_call.1} parent=1 // pred_check_branch
      %60 = sbr.rel (0) target = $region41
    $region40: #{tpu_custom_call.1} parent=1 // pred_region
      %61 = dma.done [#allocation6], 16
    $region41: #{tpu_custom_call.1} parent=1 // pred_fallthru
      _
    %62 = sfence
    %v63 = vld [vmem:[%s5] sm:$0xff]
    %v64 = vld [vmem:[%s6] sm:$0xff]
    %v65 = vld [vmem:[%s4] sm:$0xff]
    %67 = vset.pattern.permute.xlu0 0
    %68 = vperm.xlu0 %67, %v65
    %v69 = vpop.permute.xlu0 %68
    %71 = vset.pattern.permute.xlu0 1
    %72 = vperm.xlu0 %71, %v65
    %v73 = vpop.permute.xlu0 %72
    %v75 = vlaneseq
    %v76 = vshrl.u32 %v75, 7
    %vm77 = vcmp.ge.s32.totalorder %v76, 0
    %vm78 = vcmp.lt.s32.totalorder %v76, 4
    %vm79 = vmand %vm77, %vm78
    %v80 = vsel %vm79, 1, 0
    %v81 = vcvt.s32.f32 %v80
    %vm82 = vcmp.ge.s32.totalorder %v76, 4
    %vm83 = vcmp.lt.s32.totalorder %v76, 8
    %vm84 = vmand %vm82, %vm83
    %v85 = vsel %vm84, 1, 0
    %v86 = vcvt.s32.f32 %v85
    %v87 = vld [vmem:[%s3] sm:$0x3]
    %v88 = vld [vmem:[%s3 + $0x8] sm:$0x3]
    %v89 = vld [vmem:[%s3 + $0x10] sm:$0x3]
    %s90 = sld [smem:[#allocation2]]
    %v91 = vstv %s90
    %v92 = vmul.f32 %v91, %v87
    %v93 = vmul.f32 %v91, %v88
    %v94 = vmul.f32 %v91, %v89
    %v95 = vadd.f32 %v92, 0.0
    %v96 = vadd.f32 %v93, 0.0
    %v97 = vadd.f32 %v94, 0.0
    %s98 = sld [smem:[#allocation2 + $0x80]]
    %v99 = vstv %s98
    %v100 = vmul.f32 %v99, %v87
    %v101 = vmul.f32 %v99, %v88
    %v102 = vmul.f32 %v99, %v89
    %v103 = vadd.f32 %v100, 0.0
    %v104 = vadd.f32 %v101, 0.0
    %v105 = vadd.f32 %v102, 0.0
    %s106 = sld [smem:[#allocation2 + $0x1]]
    %v107 = vstv %s106
    %v108 = vmul.f32 %v107, %v87
    %v109 = vmul.f32 %v107, %v88
    %v110 = vmul.f32 %v107, %v89
    %114 = vrot.lane.b32.xlu0 %v108, 127
    %v115 = vpop.permute.xlu0 %114
    %116 = vrot.lane.b32.xlu0 %v109, 127
    %v117 = vpop.permute.xlu0 %116
    %118 = vrot.lane.b32.xlu0 %v110, 127
    %v119 = vpop.permute.xlu0 %118
    %vm120 = vcmask 1039360
    %v121 = vsel %vm120, %v115, %v117
    %v122 = vsel %vm120, %v117, %v119
    %v126 = vadd.f32 %v95, %v121
    %v127 = vadd.f32 %v96, %v122
    %v128 = vadd.f32 %v97, %v119
    %s129 = sld [smem:[#allocation2 + $0x81]]
    %v130 = vstv %s129
    %v131 = vmul.f32 %v130, %v87
    %v132 = vmul.f32 %v130, %v88
    %v133 = vmul.f32 %v130, %v89
    %137 = vrot.lane.b32.xlu0 %v131, 127
    %v138 = vpop.permute.xlu0 %137
    %139 = vrot.lane.b32.xlu0 %v132, 127
    %v140 = vpop.permute.xlu0 %139
    %141 = vrot.lane.b32.xlu0 %v133, 127
    %v142 = vpop.permute.xlu0 %141
    %v143 = vsel %vm120, %v138, %v140
    %v144 = vsel %vm120, %v140, %v142
    %v148 = vadd.f32 %v103, %v143
    %v149 = vadd.f32 %v104, %v144
    %v150 = vadd.f32 %v105, %v142
    %s151 = sld [smem:[#allocation2 + $0x2]]
    %v152 = vstv %s151
    %v153 = vmul.f32 %v152, %v87
    %v154 = vmul.f32 %v152, %v88
    %v155 = vmul.f32 %v152, %v89
    %159 = vrot.lane.b32.xlu0 %v153, 126
    %v160 = vpop.permute.xlu0 %159
    %161 = vrot.lane.b32.xlu0 %v154, 126
    %v162 = vpop.permute.xlu0 %161
    %163 = vrot.lane.b32.xlu0 %v155, 126
    %v164 = vpop.permute.xlu0 %163
    %vm165 = vcmask 1031168
    %v166 = vsel %vm165, %v160, %v162
    %v167 = vsel %vm165, %v162, %v164
    %v171 = vadd.f32 %v126, %v166
    %v172 = vadd.f32 %v127, %v167
    %v173 = vadd.f32 %v128, %v164
    %s174 = sld [smem:[#allocation2 + $0x82]]
    %v175 = vstv %s174
    %v176 = vmul.f32 %v175, %v87
    %v177 = vmul.f32 %v175, %v88
    %v178 = vmul.f32 %v175, %v89
    %182 = vrot.lane.b32.xlu0 %v176, 126
    %v183 = vpop.permute.xlu0 %182
    %184 = vrot.lane.b32.xlu0 %v177, 126
    %v185 = vpop.permute.xlu0 %184
    %186 = vrot.lane.b32.xlu0 %v178, 126
    %v187 = vpop.permute.xlu0 %186
    %v188 = vsel %vm165, %v183, %v185
    %v189 = vsel %vm165, %v185, %v187
    %v193 = vadd.f32 %v148, %v188
    %v194 = vadd.f32 %v149, %v189
    %v195 = vadd.f32 %v150, %v187
    %s196 = sld [smem:[#allocation2 + $0x3]]
    %v197 = vstv %s196
    %v198 = vmul.f32 %v197, %v87
    %v199 = vmul.f32 %v197, %v88
    %v200 = vmul.f32 %v197, %v89
    %204 = vrot.lane.b32.xlu0 %v198, 110
    %v205 = vpop.permute.xlu0 %204
    %206 = vrot.lane.b32.xlu0 %v199, 110
    %v207 = vpop.permute.xlu0 %206
    %208 = vrot.lane.b32.xlu0 %v200, 110
    %v209 = vpop.permute.xlu0 %208
    %vm210 = vcmask 900096
    %v211 = vsel %vm210, %v205, %v207
    %v212 = vsel %vm210, %v207, %v209
    %v216 = vadd.f32 %v171, %v211
    %v217 = vadd.f32 %v172, %v212
    %v218 = vadd.f32 %v173, %v209
    %s219 = sld [smem:[#allocation2 + $0x83]]
    %v220 = vstv %s219
    %v221 = vmul.f32 %v220, %v87
    %v222 = vmul.f32 %v220, %v88
    %v223 = vmul.f32 %v220, %v89
    %227 = vrot.lane.b32.xlu0 %v221, 110
    %v228 = vpop.permute.xlu0 %227
    %229 = vrot.lane.b32.xlu0 %v222, 110
    %v230 = vpop.permute.xlu0 %229
    %231 = vrot.lane.b32.xlu0 %v223, 110
    %v232 = vpop.permute.xlu0 %231
    %v233 = vsel %vm210, %v228, %v230
    %v234 = vsel %vm210, %v230, %v232
    %v238 = vadd.f32 %v193, %v233
    %v239 = vadd.f32 %v194, %v234
    %v240 = vadd.f32 %v195, %v232
    %s241 = sld [smem:[#allocation2 + $0x4]]
    %v242 = vstv %s241
    %v243 = vmul.f32 %v242, %v87
    %v244 = vmul.f32 %v242, %v88
    %v245 = vmul.f32 %v242, %v89
    %249 = vrot.lane.b32.xlu0 %v243, 109
    %v250 = vpop.permute.xlu0 %249
    %251 = vrot.lane.b32.xlu0 %v244, 109
    %v252 = vpop.permute.xlu0 %251
    %253 = vrot.lane.b32.xlu0 %v245, 109
    %v254 = vpop.permute.xlu0 %253
    %vm255 = vcmask 891904
    %v256 = vsel %vm255, %v250, %v252
    %v257 = vsel %vm255, %v252, %v254
    %v261 = vadd.f32 %v216, %v256
    %v262 = vadd.f32 %v217, %v257
    %v263 = vadd.f32 %v218, %v254
    %s264 = sld [smem:[#allocation2 + $0x84]]
    %v265 = vstv %s264
    %v266 = vmul.f32 %v265, %v87
    %v267 = vmul.f32 %v265, %v88
    %v268 = vmul.f32 %v265, %v89
    %272 = vrot.lane.b32.xlu0 %v266, 109
    %v273 = vpop.permute.xlu0 %272
    %274 = vrot.lane.b32.xlu0 %v267, 109
    %v275 = vpop.permute.xlu0 %274
    %276 = vrot.lane.b32.xlu0 %v268, 109
    %v277 = vpop.permute.xlu0 %276
    %v278 = vsel %vm255, %v273, %v275
    %v279 = vsel %vm255, %v275, %v277
    %v283 = vadd.f32 %v238, %v278
    %v284 = vadd.f32 %v239, %v279
    %v285 = vadd.f32 %v240, %v277
    %s286 = sld [smem:[#allocation2 + $0x5]]
    %v287 = vstv %s286
    %v288 = vmul.f32 %v287, %v87
    %v289 = vmul.f32 %v287, %v88
    %v290 = vmul.f32 %v287, %v89
    %294 = vrot.lane.b32.xlu0 %v288, 108
    %v295 = vpop.permute.xlu0 %294
    %296 = vrot.lane.b32.xlu0 %v289, 108
    %v297 = vpop.permute.xlu0 %296
    %298 = vrot.lane.b32.xlu0 %v290, 108
    %v299 = vpop.permute.xlu0 %298
    %vm300 = vcmask 883712
    %v301 = vsel %vm300, %v295, %v297
    %v302 = vsel %vm300, %v297, %v299
    %v306 = vadd.f32 %v261, %v301
    %v307 = vadd.f32 %v262, %v302
    %v308 = vadd.f32 %v263, %v299
    %s309 = sld [smem:[#allocation2 + $0x85]]
    %v310 = vstv %s309
    %v311 = vmul.f32 %v310, %v87
    %v312 = vmul.f32 %v310, %v88
    %v313 = vmul.f32 %v310, %v89
    %317 = vrot.lane.b32.xlu0 %v311, 108
    %v318 = vpop.permute.xlu0 %317
    %319 = vrot.lane.b32.xlu0 %v312, 108
    %v320 = vpop.permute.xlu0 %319
    %321 = vrot.lane.b32.xlu0 %v313, 108
    %v322 = vpop.permute.xlu0 %321
    %v323 = vsel %vm300, %v318, %v320
    %v324 = vsel %vm300, %v320, %v322
    %v328 = vadd.f32 %v283, %v323
    %v329 = vadd.f32 %v284, %v324
    %v330 = vadd.f32 %v285, %v322
    %s331 = sld [smem:[#allocation2 + $0x6]]
    %v332 = vstv %s331
    %v333 = vmul.f32 %v332, %v87
    %v334 = vmul.f32 %v332, %v88
    %v335 = vmul.f32 %v332, %v89
    %339 = vrot.lane.b32.xlu0 %v333, 92
    %v340 = vpop.permute.xlu0 %339
    %341 = vrot.lane.b32.xlu0 %v334, 92
    %v342 = vpop.permute.xlu0 %341
    %343 = vrot.lane.b32.xlu0 %v335, 92
    %v344 = vpop.permute.xlu0 %343
    %vm345 = vcmask 752640
    %v346 = vsel %vm345, %v340, %v342
    %v347 = vsel %vm345, %v342, %v344
    %v351 = vadd.f32 %v306, %v346
    %v352 = vadd.f32 %v307, %v347
    %v353 = vadd.f32 %v308, %v344
    %s354 = sld [smem:[#allocation2 + $0x86]]
    %v355 = vstv %s354
    %v356 = vmul.f32 %v355, %v87
    %v357 = vmul.f32 %v355, %v88
    %v358 = vmul.f32 %v355, %v89
    %362 = vrot.lane.b32.xlu0 %v356, 92
    %v363 = vpop.permute.xlu0 %362
    %364 = vrot.lane.b32.xlu0 %v357, 92
    %v365 = vpop.permute.xlu0 %364
    %366 = vrot.lane.b32.xlu0 %v358, 92
    %v367 = vpop.permute.xlu0 %366
    %v368 = vsel %vm345, %v363, %v365
    %v369 = vsel %vm345, %v365, %v367
    %v373 = vadd.f32 %v328, %v368
    %v374 = vadd.f32 %v329, %v369
    %v375 = vadd.f32 %v330, %v367
    %s376 = sld [smem:[#allocation2 + $0x7]]
    %v377 = vstv %s376
    %v378 = vmul.f32 %v377, %v87
    %v379 = vmul.f32 %v377, %v88
    %v380 = vmul.f32 %v377, %v89
    %384 = vrot.lane.b32.xlu0 %v378, 91
    %v385 = vpop.permute.xlu0 %384
    %386 = vrot.lane.b32.xlu0 %v379, 91
    %v387 = vpop.permute.xlu0 %386
    %388 = vrot.lane.b32.xlu0 %v380, 91
    %v389 = vpop.permute.xlu0 %388
    %vm390 = vcmask 744448
    %v391 = vsel %vm390, %v385, %v387
    %v392 = vsel %vm390, %v387, %v389
    %v396 = vadd.f32 %v351, %v391
    %v397 = vadd.f32 %v352, %v392
    %v398 = vadd.f32 %v353, %v389
    %s399 = sld [smem:[#allocation2 + $0x87]]
    %v400 = vstv %s399
    %v401 = vmul.f32 %v400, %v87
    %v402 = vmul.f32 %v400, %v88
    %v403 = vmul.f32 %v400, %v89
    %407 = vrot.lane.b32.xlu0 %v401, 91
    %v408 = vpop.permute.xlu0 %407
    %409 = vrot.lane.b32.xlu0 %v402, 91
    %v410 = vpop.permute.xlu0 %409
    %411 = vrot.lane.b32.xlu0 %v403, 91
    %v412 = vpop.permute.xlu0 %411
    %v413 = vsel %vm390, %v408, %v410
    %v414 = vsel %vm390, %v410, %v412
    %v418 = vadd.f32 %v373, %v413
    %v419 = vadd.f32 %v374, %v414
    %v420 = vadd.f32 %v375, %v412
    %s421 = sld [smem:[#allocation2 + $0x8]]
    %v422 = vstv %s421
    %v423 = vmul.f32 %v422, %v87
    %v424 = vmul.f32 %v422, %v88
    %v425 = vmul.f32 %v422, %v89
    %429 = vrot.lane.b32.xlu0 %v423, 90
    %v430 = vpop.permute.xlu0 %429
    %431 = vrot.lane.b32.xlu0 %v424, 90
    %v432 = vpop.permute.xlu0 %431
    %433 = vrot.lane.b32.xlu0 %v425, 90
    %v434 = vpop.permute.xlu0 %433
    %vm435 = vcmask 736256
    %v436 = vsel %vm435, %v430, %v432
    %v437 = vsel %vm435, %v432, %v434
    %v441 = vadd.f32 %v396, %v436
    %v442 = vadd.f32 %v397, %v437
    %v443 = vadd.f32 %v398, %v434
    %s444 = sld [smem:[#allocation2 + $0x88]]
    %v445 = vstv %s444
    %v446 = vmul.f32 %v445, %v87
    %v447 = vmul.f32 %v445, %v88
    %v448 = vmul.f32 %v445, %v89
    %452 = vrot.lane.b32.xlu0 %v446, 90
    %v453 = vpop.permute.xlu0 %452
    %454 = vrot.lane.b32.xlu0 %v447, 90
    %v455 = vpop.permute.xlu0 %454
    %456 = vrot.lane.b32.xlu0 %v448, 90
    %v457 = vpop.permute.xlu0 %456
    %v458 = vsel %vm435, %v453, %v455
    %v459 = vsel %vm435, %v455, %v457
    %v463 = vadd.f32 %v418, %v458
    %v464 = vadd.f32 %v419, %v459
    %v465 = vadd.f32 %v420, %v457
    %v466 = vld [vmem:[%s3] sm:$0xc]
    %v467 = vld [vmem:[%s3 + $0x8] sm:$0xc]
    %v468 = vld [vmem:[%s3 + $0x10] sm:$0xc]
    %s469 = sld [smem:[#allocation2 + $0x9]]
    %v470 = vstv %s469
    %v471 = vmul.f32 %v470, %v466
    %v472 = vmul.f32 %v470, %v467
    %v473 = vmul.f32 %v470, %v468
    %v477 = vrot.slane %v471, 2
    %v478 = vrot.slane %v472, 2
    %v479 = vrot.slane %v473, 2
    %v483 = vadd.f32 %v441, %v477
    %v484 = vadd.f32 %v442, %v478
    %v485 = vadd.f32 %v443, %v479
    %s486 = sld [smem:[#allocation2 + $0x89]]
    %v487 = vstv %s486
    %v488 = vmul.f32 %v487, %v466
    %v489 = vmul.f32 %v487, %v467
    %v490 = vmul.f32 %v487, %v468
    %v494 = vrot.slane %v488, 2
    %v495 = vrot.slane %v489, 2
    %v496 = vrot.slane %v490, 2
    %v500 = vadd.f32 %v463, %v494
    %v501 = vadd.f32 %v464, %v495
    %v502 = vadd.f32 %v465, %v496
    %s503 = sld [smem:[#allocation2 + $0xa]]
    %v504 = vstv %s503
    %v505 = vmul.f32 %v504, %v466
    %v506 = vmul.f32 %v504, %v467
    %v507 = vmul.f32 %v504, %v468
    %v511 = vrot.slane %v505, 2
    %v512 = vrot.slane %v506, 2
    %v513 = vrot.slane %v507, 2
    %514 = vrot.lane.b32.xlu0 %v511, 127
    %v515 = vpop.permute.xlu0 %514
    %516 = vrot.lane.b32.xlu0 %v512, 127
    %v517 = vpop.permute.xlu0 %516
    %518 = vrot.lane.b32.xlu0 %v513, 127
    %v519 = vpop.permute.xlu0 %518
    %v520 = vsel %vm120, %v515, %v517
    %v521 = vsel %vm120, %v517, %v519
    %v525 = vadd.f32 %v483, %v520
    %v526 = vadd.f32 %v484, %v521
    %v527 = vadd.f32 %v485, %v519
    %s528 = sld [smem:[#allocation2 + $0x8a]]
    %v529 = vstv %s528
    %v530 = vmul.f32 %v529, %v466
    %v531 = vmul.f32 %v529, %v467
    %v532 = vmul.f32 %v529, %v468
    %v536 = vrot.slane %v530, 2
    %v537 = vrot.slane %v531, 2
    %v538 = vrot.slane %v532, 2
    %539 = vrot.lane.b32.xlu0 %v536, 127
    %v540 = vpop.permute.xlu0 %539
    %541 = vrot.lane.b32.xlu0 %v537, 127
    %v542 = vpop.permute.xlu0 %541
    %543 = vrot.lane.b32.xlu0 %v538, 127
    %v544 = vpop.permute.xlu0 %543
    %v545 = vsel %vm120, %v540, %v542
    %v546 = vsel %vm120, %v542, %v544
    %v550 = vadd.f32 %v500, %v545
    %v551 = vadd.f32 %v501, %v546
    %v552 = vadd.f32 %v502, %v544
    %s553 = sld [smem:[#allocation2 + $0xb]]
    %v554 = vstv %s553
    %v555 = vmul.f32 %v554, %v466
    %v556 = vmul.f32 %v554, %v467
    %v557 = vmul.f32 %v554, %v468
    %v561 = vrot.slane %v555, 2
    %v562 = vrot.slane %v556, 2
    %v563 = vrot.slane %v557, 2
    %564 = vrot.lane.b32.xlu0 %v561, 126
    %v565 = vpop.permute.xlu0 %564
    %566 = vrot.lane.b32.xlu0 %v562, 126
    %v567 = vpop.permute.xlu0 %566
    %568 = vrot.lane.b32.xlu0 %v563, 126
    %v569 = vpop.permute.xlu0 %568
    %v570 = vsel %vm165, %v565, %v567
    %v571 = vsel %vm165, %v567, %v569
    %v575 = vadd.f32 %v525, %v570
    %v576 = vadd.f32 %v526, %v571
    %v577 = vadd.f32 %v527, %v569
    %s578 = sld [smem:[#allocation2 + $0x8b]]
    %v579 = vstv %s578
    %v580 = vmul.f32 %v579, %v466
    %v581 = vmul.f32 %v579, %v467
    %v582 = vmul.f32 %v579, %v468
    %v586 = vrot.slane %v580, 2
    %v587 = vrot.slane %v581, 2
    %v588 = vrot.slane %v582, 2
    %589 = vrot.lane.b32.xlu0 %v586, 126
    %v590 = vpop.permute.xlu0 %589
    %591 = vrot.lane.b32.xlu0 %v587, 126
    %v592 = vpop.permute.xlu0 %591
    %593 = vrot.lane.b32.xlu0 %v588, 126
    %v594 = vpop.permute.xlu0 %593
    %v595 = vsel %vm165, %v590, %v592
    %v596 = vsel %vm165, %v592, %v594
    %v600 = vadd.f32 %v550, %v595
    %v601 = vadd.f32 %v551, %v596
    %v602 = vadd.f32 %v552, %v594
    %s603 = sld [smem:[#allocation2 + $0xc]]
    %v604 = vstv %s603
    %v605 = vmul.f32 %v604, %v466
    %v606 = vmul.f32 %v604, %v467
    %v607 = vmul.f32 %v604, %v468
    %v611 = vrot.slane %v605, 2
    %v612 = vrot.slane %v606, 2
    %v613 = vrot.slane %v607, 2
    %614 = vrot.lane.b32.xlu0 %v611, 110
    %v615 = vpop.permute.xlu0 %614
    %616 = vrot.lane.b32.xlu0 %v612, 110
    %v617 = vpop.permute.xlu0 %616
    %618 = vrot.lane.b32.xlu0 %v613, 110
    %v619 = vpop.permute.xlu0 %618
    %v620 = vsel %vm210, %v615, %v617
    %v621 = vsel %vm210, %v617, %v619
    %v625 = vadd.f32 %v575, %v620
    %v626 = vadd.f32 %v576, %v621
    %v627 = vadd.f32 %v577, %v619
    %s628 = sld [smem:[#allocation2 + $0x8c]]
    %v629 = vstv %s628
    %v630 = vmul.f32 %v629, %v466
    %v631 = vmul.f32 %v629, %v467
    %v632 = vmul.f32 %v629, %v468
    %v636 = vrot.slane %v630, 2
    %v637 = vrot.slane %v631, 2
    %v638 = vrot.slane %v632, 2
    %639 = vrot.lane.b32.xlu0 %v636, 110
    %v640 = vpop.permute.xlu0 %639
    %641 = vrot.lane.b32.xlu0 %v637, 110
    %v642 = vpop.permute.xlu0 %641
    %643 = vrot.lane.b32.xlu0 %v638, 110
    %v644 = vpop.permute.xlu0 %643
    %v645 = vsel %vm210, %v640, %v642
    %v646 = vsel %vm210, %v642, %v644
    %v650 = vadd.f32 %v600, %v645
    %v651 = vadd.f32 %v601, %v646
    %v652 = vadd.f32 %v602, %v644
    %s653 = sld [smem:[#allocation2 + $0xd]]
    %v654 = vstv %s653
    %v655 = vmul.f32 %v654, %v466
    %v656 = vmul.f32 %v654, %v467
    %v657 = vmul.f32 %v654, %v468
    %v661 = vrot.slane %v655, 2
    %v662 = vrot.slane %v656, 2
    %v663 = vrot.slane %v657, 2
    %664 = vrot.lane.b32.xlu0 %v661, 109
    %v665 = vpop.permute.xlu0 %664
    %666 = vrot.lane.b32.xlu0 %v662, 109
    %v667 = vpop.permute.xlu0 %666
    %668 = vrot.lane.b32.xlu0 %v663, 109
    %v669 = vpop.permute.xlu0 %668
    %v670 = vsel %vm255, %v665, %v667
    %v671 = vsel %vm255, %v667, %v669
    %v675 = vadd.f32 %v625, %v670
    %v676 = vadd.f32 %v626, %v671
    %v677 = vadd.f32 %v627, %v669
    %s678 = sld [smem:[#allocation2 + $0x8d]]
    %v679 = vstv %s678
    %v680 = vmul.f32 %v679, %v466
    %v681 = vmul.f32 %v679, %v467
    %v682 = vmul.f32 %v679, %v468
    %v686 = vrot.slane %v680, 2
    %v687 = vrot.slane %v681, 2
    %v688 = vrot.slane %v682, 2
    %689 = vrot.lane.b32.xlu0 %v686, 109
    %v690 = vpop.permute.xlu0 %689
    %691 = vrot.lane.b32.xlu0 %v687, 109
    %v692 = vpop.permute.xlu0 %691
    %693 = vrot.lane.b32.xlu0 %v688, 109
    %v694 = vpop.permute.xlu0 %693
    %v695 = vsel %vm255, %v690, %v692
    %v696 = vsel %vm255, %v692, %v694
    %v700 = vadd.f32 %v650, %v695
    %v701 = vadd.f32 %v651, %v696
    %v702 = vadd.f32 %v652, %v694
    %s703 = sld [smem:[#allocation2 + $0xe]]
    %v704 = vstv %s703
    %v705 = vmul.f32 %v704, %v466
    %v706 = vmul.f32 %v704, %v467
    %v707 = vmul.f32 %v704, %v468
    %v711 = vrot.slane %v705, 2
    %v712 = vrot.slane %v706, 2
    %v713 = vrot.slane %v707, 2
    %714 = vrot.lane.b32.xlu0 %v711, 108
    %v715 = vpop.permute.xlu0 %714
    %716 = vrot.lane.b32.xlu0 %v712, 108
    %v717 = vpop.permute.xlu0 %716
    %718 = vrot.lane.b32.xlu0 %v713, 108
    %v719 = vpop.permute.xlu0 %718
    %v720 = vsel %vm300, %v715, %v717
    %v721 = vsel %vm300, %v717, %v719
    %v725 = vadd.f32 %v675, %v720
    %v726 = vadd.f32 %v676, %v721
    %v727 = vadd.f32 %v677, %v719
    %s728 = sld [smem:[#allocation2 + $0x8e]]
    %v729 = vstv %s728
    %v730 = vmul.f32 %v729, %v466
    %v731 = vmul.f32 %v729, %v467
    %v732 = vmul.f32 %v729, %v468
    %v736 = vrot.slane %v730, 2
    %v737 = vrot.slane %v731, 2
    %v738 = vrot.slane %v732, 2
    %739 = vrot.lane.b32.xlu0 %v736, 108
    %v740 = vpop.permute.xlu0 %739
    %741 = vrot.lane.b32.xlu0 %v737, 108
    %v742 = vpop.permute.xlu0 %741
    %743 = vrot.lane.b32.xlu0 %v738, 108
    %v744 = vpop.permute.xlu0 %743
    %v745 = vsel %vm300, %v740, %v742
    %v746 = vsel %vm300, %v742, %v744
    %v750 = vadd.f32 %v700, %v745
    %v751 = vadd.f32 %v701, %v746
    %v752 = vadd.f32 %v702, %v744
    %s753 = sld [smem:[#allocation2 + $0xf]]
    %v754 = vstv %s753
    %v755 = vmul.f32 %v754, %v466
    %v756 = vmul.f32 %v754, %v467
    %v757 = vmul.f32 %v754, %v468
    %v761 = vrot.slane %v755, 2
    %v762 = vrot.slane %v756, 2
    %v763 = vrot.slane %v757, 2
    %764 = vrot.lane.b32.xlu0 %v761, 92
    %v765 = vpop.permute.xlu0 %764
    %766 = vrot.lane.b32.xlu0 %v762, 92
    %v767 = vpop.permute.xlu0 %766
    %768 = vrot.lane.b32.xlu0 %v763, 92
    %v769 = vpop.permute.xlu0 %768
    %v770 = vsel %vm345, %v765, %v767
    %v771 = vsel %vm345, %v767, %v769
    %v775 = vadd.f32 %v725, %v770
    %v776 = vadd.f32 %v726, %v771
    %v777 = vadd.f32 %v727, %v769
    %s778 = sld [smem:[#allocation2 + $0x8f]]
    %v779 = vstv %s778
    %v780 = vmul.f32 %v779, %v466
    %v781 = vmul.f32 %v779, %v467
    %v782 = vmul.f32 %v779, %v468
    %v786 = vrot.slane %v780, 2
    %v787 = vrot.slane %v781, 2
    %v788 = vrot.slane %v782, 2
    %789 = vrot.lane.b32.xlu0 %v786, 92
    %v790 = vpop.permute.xlu0 %789
    %791 = vrot.lane.b32.xlu0 %v787, 92
    %v792 = vpop.permute.xlu0 %791
    %793 = vrot.lane.b32.xlu0 %v788, 92
    %v794 = vpop.permute.xlu0 %793
    %v795 = vsel %vm345, %v790, %v792
    %v796 = vsel %vm345, %v792, %v794
    %v800 = vadd.f32 %v750, %v795
    %v801 = vadd.f32 %v751, %v796
    %v802 = vadd.f32 %v752, %v794
    %s803 = sld [smem:[#allocation2 + $0x10]]
    %v804 = vstv %s803
    %v805 = vmul.f32 %v804, %v466
    %v806 = vmul.f32 %v804, %v467
    %v807 = vmul.f32 %v804, %v468
    %v811 = vrot.slane %v805, 2
    %v812 = vrot.slane %v806, 2
    %v813 = vrot.slane %v807, 2
    %814 = vrot.lane.b32.xlu0 %v811, 91
    %v815 = vpop.permute.xlu0 %814
    %816 = vrot.lane.b32.xlu0 %v812, 91
    %v817 = vpop.permute.xlu0 %816
    %818 = vrot.lane.b32.xlu0 %v813, 91
    %v819 = vpop.permute.xlu0 %818
    %v820 = vsel %vm390, %v815, %v817
    %v821 = vsel %vm390, %v817, %v819
    %v825 = vadd.f32 %v775, %v820
    %v826 = vadd.f32 %v776, %v821
    %v827 = vadd.f32 %v777, %v819
    %s828 = sld [smem:[#allocation2 + $0x90]]
    %v829 = vstv %s828
    %v830 = vmul.f32 %v829, %v466
    %v831 = vmul.f32 %v829, %v467
    %v832 = vmul.f32 %v829, %v468
    %v836 = vrot.slane %v830, 2
    %v837 = vrot.slane %v831, 2
    %v838 = vrot.slane %v832, 2
    %839 = vrot.lane.b32.xlu0 %v836, 91
    %v840 = vpop.permute.xlu0 %839
    %841 = vrot.lane.b32.xlu0 %v837, 91
    %v842 = vpop.permute.xlu0 %841
    %843 = vrot.lane.b32.xlu0 %v838, 91
    %v844 = vpop.permute.xlu0 %843
    %v845 = vsel %vm390, %v840, %v842
    %v846 = vsel %vm390, %v842, %v844
    %v850 = vadd.f32 %v800, %v845
    %v851 = vadd.f32 %v801, %v846
    %v852 = vadd.f32 %v802, %v844
    %s853 = sld [smem:[#allocation2 + $0x11]]
    %v854 = vstv %s853
    %v855 = vmul.f32 %v854, %v466
    %v856 = vmul.f32 %v854, %v467
    %v857 = vmul.f32 %v854, %v468
    %v861 = vrot.slane %v855, 2
    %v862 = vrot.slane %v856, 2
    %v863 = vrot.slane %v857, 2
    %864 = vrot.lane.b32.xlu0 %v861, 90
    %v865 = vpop.permute.xlu0 %864
    %866 = vrot.lane.b32.xlu0 %v862, 90
    %v867 = vpop.permute.xlu0 %866
    %868 = vrot.lane.b32.xlu0 %v863, 90
    %v869 = vpop.permute.xlu0 %868
    %v870 = vsel %vm435, %v865, %v867
    %v871 = vsel %vm435, %v867, %v869
    %v875 = vadd.f32 %v825, %v870
    %v876 = vadd.f32 %v826, %v871
    %v877 = vadd.f32 %v827, %v869
    %s878 = sld [smem:[#allocation2 + $0x91]]
    %v879 = vstv %s878
    %v880 = vmul.f32 %v879, %v466
    %v881 = vmul.f32 %v879, %v467
    %v882 = vmul.f32 %v879, %v468
    %v886 = vrot.slane %v880, 2
    %v887 = vrot.slane %v881, 2
    %v888 = vrot.slane %v882, 2
    %889 = vrot.lane.b32.xlu0 %v886, 90
    %v890 = vpop.permute.xlu0 %889
    %891 = vrot.lane.b32.xlu0 %v887, 90
    %v892 = vpop.permute.xlu0 %891
    %893 = vrot.lane.b32.xlu0 %v888, 90
    %v894 = vpop.permute.xlu0 %893
    %v895 = vsel %vm435, %v890, %v892
    %v896 = vsel %vm435, %v892, %v894
    %v900 = vadd.f32 %v850, %v895
    %v901 = vadd.f32 %v851, %v896
    %v902 = vadd.f32 %v852, %v894
    %v903 = vld [vmem:[%s3] sm:$0x30]
    %v904 = vld [vmem:[%s3 + $0x8] sm:$0x30]
    %v905 = vld [vmem:[%s3 + $0x10] sm:$0x30]
    %s906 = sld [smem:[#allocation2 + $0x12]]
    %v907 = vstv %s906
    %v908 = vmul.f32 %v907, %v903
    %v909 = vmul.f32 %v907, %v904
    %v910 = vmul.f32 %v907, %v905
    %v914 = vrot.slane %v908, 4
    %v915 = vrot.slane %v909, 4
    %v916 = vrot.slane %v910, 4
    %v920 = vadd.f32 %v875, %v914
    %v921 = vadd.f32 %v876, %v915
    %v922 = vadd.f32 %v877, %v916
    %s923 = sld [smem:[#allocation2 + $0x92]]
    %v924 = vstv %s923
    %v925 = vmul.f32 %v924, %v903
    %v926 = vmul.f32 %v924, %v904
    %v927 = vmul.f32 %v924, %v905
    %v931 = vrot.slane %v925, 4
    %v932 = vrot.slane %v926, 4
    %v933 = vrot.slane %v927, 4
    %v937 = vadd.f32 %v900, %v931
    %v938 = vadd.f32 %v901, %v932
    %v939 = vadd.f32 %v902, %v933
    %s940 = sld [smem:[#allocation2 + $0x13]]
    %v941 = vstv %s940
    %v942 = vmul.f32 %v941, %v903
    %v943 = vmul.f32 %v941, %v904
    %v944 = vmul.f32 %v941, %v905
    %v948 = vrot.slane %v942, 4
    %v949 = vrot.slane %v943, 4
    %v950 = vrot.slane %v944, 4
    %951 = vrot.lane.b32.xlu0 %v948, 127
    %v952 = vpop.permute.xlu0 %951
    %953 = vrot.lane.b32.xlu0 %v949, 127
    %v954 = vpop.permute.xlu0 %953
    %955 = vrot.lane.b32.xlu0 %v950, 127
    %v956 = vpop.permute.xlu0 %955
    %v957 = vsel %vm120, %v952, %v954
    %v958 = vsel %vm120, %v954, %v956
    %v962 = vadd.f32 %v920, %v957
    %v963 = vadd.f32 %v921, %v958
    %v964 = vadd.f32 %v922, %v956
    %s965 = sld [smem:[#allocation2 + $0x93]]
    %v966 = vstv %s965
    %v967 = vmul.f32 %v966, %v903
    %v968 = vmul.f32 %v966, %v904
    %v969 = vmul.f32 %v966, %v905
    %v973 = vrot.slane %v967, 4
    %v974 = vrot.slane %v968, 4
    %v975 = vrot.slane %v969, 4
    %976 = vrot.lane.b32.xlu0 %v973, 127
    %v977 = vpop.permute.xlu0 %976
    %978 = vrot.lane.b32.xlu0 %v974, 127
    %v979 = vpop.permute.xlu0 %978
    %980 = vrot.lane.b32.xlu0 %v975, 127
    %v981 = vpop.permute.xlu0 %980
    %v982 = vsel %vm120, %v977, %v979
    %v983 = vsel %vm120, %v979, %v981
    %v987 = vadd.f32 %v937, %v982
    %v988 = vadd.f32 %v938, %v983
    %v989 = vadd.f32 %v939, %v981
    %s990 = sld [smem:[#allocation2 + $0x14]]
    %v991 = vstv %s990
    %v992 = vmul.f32 %v991, %v903
    %v993 = vmul.f32 %v991, %v904
    %v994 = vmul.f32 %v991, %v905
    %v998 = vrot.slane %v992, 4
    %v999 = vrot.slane %v993, 4
    %v1000 = vrot.slane %v994, 4
    %1001 = vrot.lane.b32.xlu0 %v998, 126
    %v1002 = vpop.permute.xlu0 %1001
    %1003 = vrot.lane.b32.xlu0 %v999, 126
    %v1004 = vpop.permute.xlu0 %1003
    %1005 = vrot.lane.b32.xlu0 %v1000, 126
    %v1006 = vpop.permute.xlu0 %1005
    %v1007 = vsel %vm165, %v1002, %v1004
    %v1008 = vsel %vm165, %v1004, %v1006
    %v1012 = vadd.f32 %v962, %v1007
    %v1013 = vadd.f32 %v963, %v1008
    %v1014 = vadd.f32 %v964, %v1006
    %s1015 = sld [smem:[#allocation2 + $0x94]]
    %v1016 = vstv %s1015
    %v1017 = vmul.f32 %v1016, %v903
    %v1018 = vmul.f32 %v1016, %v904
    %v1019 = vmul.f32 %v1016, %v905
    %v1023 = vrot.slane %v1017, 4
    %v1024 = vrot.slane %v1018, 4
    %v1025 = vrot.slane %v1019, 4
    %1026 = vrot.lane.b32.xlu0 %v1023, 126
    %v1027 = vpop.permute.xlu0 %1026
    %1028 = vrot.lane.b32.xlu0 %v1024, 126
    %v1029 = vpop.permute.xlu0 %1028
    %1030 = vrot.lane.b32.xlu0 %v1025, 126
    %v1031 = vpop.permute.xlu0 %1030
    %v1032 = vsel %vm165, %v1027, %v1029
    %v1033 = vsel %vm165, %v1029, %v1031
    %v1037 = vadd.f32 %v987, %v1032
    %v1038 = vadd.f32 %v988, %v1033
    %v1039 = vadd.f32 %v989, %v1031
    %s1040 = sld [smem:[#allocation2 + $0x15]]
    %v1041 = vstv %s1040
    %v1042 = vmul.f32 %v1041, %v903
    %v1043 = vmul.f32 %v1041, %v904
    %v1044 = vmul.f32 %v1041, %v905
    %v1048 = vrot.slane %v1042, 4
    %v1049 = vrot.slane %v1043, 4
    %v1050 = vrot.slane %v1044, 4
    %1051 = vrot.lane.b32.xlu0 %v1048, 110
    %v1052 = vpop.permute.xlu0 %1051
    %1053 = vrot.lane.b32.xlu0 %v1049, 110
    %v1054 = vpop.permute.xlu0 %1053
    %1055 = vrot.lane.b32.xlu0 %v1050, 110
    %v1056 = vpop.permute.xlu0 %1055
    %v1057 = vsel %vm210, %v1052, %v1054
    %v1058 = vsel %vm210, %v1054, %v1056
    %v1062 = vadd.f32 %v1012, %v1057
    %v1063 = vadd.f32 %v1013, %v1058
    %v1064 = vadd.f32 %v1014, %v1056
    %s1065 = sld [smem:[#allocation2 + $0x95]]
    %v1066 = vstv %s1065
    %v1067 = vmul.f32 %v1066, %v903
    %v1068 = vmul.f32 %v1066, %v904
    %v1069 = vmul.f32 %v1066, %v905
    %v1073 = vrot.slane %v1067, 4
    %v1074 = vrot.slane %v1068, 4
    %v1075 = vrot.slane %v1069, 4
    %1076 = vrot.lane.b32.xlu0 %v1073, 110
    %v1077 = vpop.permute.xlu0 %1076
    %1078 = vrot.lane.b32.xlu0 %v1074, 110
    %v1079 = vpop.permute.xlu0 %1078
    %1080 = vrot.lane.b32.xlu0 %v1075, 110
    %v1081 = vpop.permute.xlu0 %1080
    %v1082 = vsel %vm210, %v1077, %v1079
    %v1083 = vsel %vm210, %v1079, %v1081
    %v1087 = vadd.f32 %v1037, %v1082
    %v1088 = vadd.f32 %v1038, %v1083
    %v1089 = vadd.f32 %v1039, %v1081
    %s1090 = sld [smem:[#allocation2 + $0x16]]
    %v1091 = vstv %s1090
    %v1092 = vmul.f32 %v1091, %v903
    %v1093 = vmul.f32 %v1091, %v904
    %v1094 = vmul.f32 %v1091, %v905
    %v1098 = vrot.slane %v1092, 4
    %v1099 = vrot.slane %v1093, 4
    %v1100 = vrot.slane %v1094, 4
    %1101 = vrot.lane.b32.xlu0 %v1098, 109
    %v1102 = vpop.permute.xlu0 %1101
    %1103 = vrot.lane.b32.xlu0 %v1099, 109
    %v1104 = vpop.permute.xlu0 %1103
    %1105 = vrot.lane.b32.xlu0 %v1100, 109
    %v1106 = vpop.permute.xlu0 %1105
    %v1107 = vsel %vm255, %v1102, %v1104
    %v1108 = vsel %vm255, %v1104, %v1106
    %v1112 = vadd.f32 %v1062, %v1107
    %v1113 = vadd.f32 %v1063, %v1108
    %v1114 = vadd.f32 %v1064, %v1106
    %s1115 = sld [smem:[#allocation2 + $0x96]]
    %v1116 = vstv %s1115
    %v1117 = vmul.f32 %v1116, %v903
    %v1118 = vmul.f32 %v1116, %v904
    %v1119 = vmul.f32 %v1116, %v905
    %v1123 = vrot.slane %v1117, 4
    %v1124 = vrot.slane %v1118, 4
    %v1125 = vrot.slane %v1119, 4
    %1126 = vrot.lane.b32.xlu0 %v1123, 109
    %v1127 = vpop.permute.xlu0 %1126
    %1128 = vrot.lane.b32.xlu0 %v1124, 109
    %v1129 = vpop.permute.xlu0 %1128
    %1130 = vrot.lane.b32.xlu0 %v1125, 109
    %v1131 = vpop.permute.xlu0 %1130
    %v1132 = vsel %vm255, %v1127, %v1129
    %v1133 = vsel %vm255, %v1129, %v1131
    %v1137 = vadd.f32 %v1087, %v1132
    %v1138 = vadd.f32 %v1088, %v1133
    %v1139 = vadd.f32 %v1089, %v1131
    %s1140 = sld [smem:[#allocation2 + $0x17]]
    %v1141 = vstv %s1140
    %v1142 = vmul.f32 %v1141, %v903
    %v1143 = vmul.f32 %v1141, %v904
    %v1144 = vmul.f32 %v1141, %v905
    %v1148 = vrot.slane %v1142, 4
    %v1149 = vrot.slane %v1143, 4
    %v1150 = vrot.slane %v1144, 4
    %1151 = vrot.lane.b32.xlu0 %v1148, 108
    %v1152 = vpop.permute.xlu0 %1151
    %1153 = vrot.lane.b32.xlu0 %v1149, 108
    %v1154 = vpop.permute.xlu0 %1153
    %1155 = vrot.lane.b32.xlu0 %v1150, 108
    %v1156 = vpop.permute.xlu0 %1155
    %v1157 = vsel %vm300, %v1152, %v1154
    %v1158 = vsel %vm300, %v1154, %v1156
    %v1162 = vadd.f32 %v1112, %v1157
    %v1163 = vadd.f32 %v1113, %v1158
    %v1164 = vadd.f32 %v1114, %v1156
    %s1165 = sld [smem:[#allocation2 + $0x97]]
    %v1166 = vstv %s1165
    %v1167 = vmul.f32 %v1166, %v903
    %v1168 = vmul.f32 %v1166, %v904
    %v1169 = vmul.f32 %v1166, %v905
    %v1173 = vrot.slane %v1167, 4
    %v1174 = vrot.slane %v1168, 4
    %v1175 = vrot.slane %v1169, 4
    %1176 = vrot.lane.b32.xlu0 %v1173, 108
    %v1177 = vpop.permute.xlu0 %1176
    %1178 = vrot.lane.b32.xlu0 %v1174, 108
    %v1179 = vpop.permute.xlu0 %1178
    %1180 = vrot.lane.b32.xlu0 %v1175, 108
    %v1181 = vpop.permute.xlu0 %1180
    %v1182 = vsel %vm300, %v1177, %v1179
    %v1183 = vsel %vm300, %v1179, %v1181
    %v1187 = vadd.f32 %v1137, %v1182
    %v1188 = vadd.f32 %v1138, %v1183
    %v1189 = vadd.f32 %v1139, %v1181
    %s1190 = sld [smem:[#allocation2 + $0x18]]
    %v1191 = vstv %s1190
    %v1192 = vmul.f32 %v1191, %v903
    %v1193 = vmul.f32 %v1191, %v904
    %v1194 = vmul.f32 %v1191, %v905
    %v1198 = vrot.slane %v1192, 4
    %v1199 = vrot.slane %v1193, 4
    %v1200 = vrot.slane %v1194, 4
    %1201 = vrot.lane.b32.xlu0 %v1198, 92
    %v1202 = vpop.permute.xlu0 %1201
    %1203 = vrot.lane.b32.xlu0 %v1199, 92
    %v1204 = vpop.permute.xlu0 %1203
    %1205 = vrot.lane.b32.xlu0 %v1200, 92
    %v1206 = vpop.permute.xlu0 %1205
    %v1207 = vsel %vm345, %v1202, %v1204
    %v1208 = vsel %vm345, %v1204, %v1206
    %v1212 = vadd.f32 %v1162, %v1207
    %v1213 = vadd.f32 %v1163, %v1208
    %v1214 = vadd.f32 %v1164, %v1206
    %s1215 = sld [smem:[#allocation2 + $0x98]]
    %v1216 = vstv %s1215
    %v1217 = vmul.f32 %v1216, %v903
    %v1218 = vmul.f32 %v1216, %v904
    %v1219 = vmul.f32 %v1216, %v905
    %v1223 = vrot.slane %v1217, 4
    %v1224 = vrot.slane %v1218, 4
    %v1225 = vrot.slane %v1219, 4
    %1226 = vrot.lane.b32.xlu0 %v1223, 92
    %v1227 = vpop.permute.xlu0 %1226
    %1228 = vrot.lane.b32.xlu0 %v1224, 92
    %v1229 = vpop.permute.xlu0 %1228
    %1230 = vrot.lane.b32.xlu0 %v1225, 92
    %v1231 = vpop.permute.xlu0 %1230
    %v1232 = vsel %vm345, %v1227, %v1229
    %v1233 = vsel %vm345, %v1229, %v1231
    %v1237 = vadd.f32 %v1187, %v1232
    %v1238 = vadd.f32 %v1188, %v1233
    %v1239 = vadd.f32 %v1189, %v1231
    %s1240 = sld [smem:[#allocation2 + $0x19]]
    %v1241 = vstv %s1240
    %v1242 = vmul.f32 %v1241, %v903
    %v1243 = vmul.f32 %v1241, %v904
    %v1244 = vmul.f32 %v1241, %v905
    %v1248 = vrot.slane %v1242, 4
    %v1249 = vrot.slane %v1243, 4
    %v1250 = vrot.slane %v1244, 4
    %1251 = vrot.lane.b32.xlu0 %v1248, 91
    %v1252 = vpop.permute.xlu0 %1251
    %1253 = vrot.lane.b32.xlu0 %v1249, 91
    %v1254 = vpop.permute.xlu0 %1253
    %1255 = vrot.lane.b32.xlu0 %v1250, 91
    %v1256 = vpop.permute.xlu0 %1255
    %v1257 = vsel %vm390, %v1252, %v1254
    %v1258 = vsel %vm390, %v1254, %v1256
    %v1262 = vadd.f32 %v1212, %v1257
    %v1263 = vadd.f32 %v1213, %v1258
    %v1264 = vadd.f32 %v1214, %v1256
    %s1265 = sld [smem:[#allocation2 + $0x99]]
    %v1266 = vstv %s1265
    %v1267 = vmul.f32 %v1266, %v903
    %v1268 = vmul.f32 %v1266, %v904
    %v1269 = vmul.f32 %v1266, %v905
    %v1273 = vrot.slane %v1267, 4
    %v1274 = vrot.slane %v1268, 4
    %v1275 = vrot.slane %v1269, 4
    %1276 = vrot.lane.b32.xlu0 %v1273, 91
    %v1277 = vpop.permute.xlu0 %1276
    %1278 = vrot.lane.b32.xlu0 %v1274, 91
    %v1279 = vpop.permute.xlu0 %1278
    %1280 = vrot.lane.b32.xlu0 %v1275, 91
    %v1281 = vpop.permute.xlu0 %1280
    %v1282 = vsel %vm390, %v1277, %v1279
    %v1283 = vsel %vm390, %v1279, %v1281
    %v1287 = vadd.f32 %v1237, %v1282
    %v1288 = vadd.f32 %v1238, %v1283
    %v1289 = vadd.f32 %v1239, %v1281
    %s1290 = sld [smem:[#allocation2 + $0x1a]]
    %v1291 = vstv %s1290
    %v1292 = vmul.f32 %v1291, %v903
    %v1293 = vmul.f32 %v1291, %v904
    %v1294 = vmul.f32 %v1291, %v905
    %v1298 = vrot.slane %v1292, 4
    %v1299 = vrot.slane %v1293, 4
    %v1300 = vrot.slane %v1294, 4
    %1301 = vrot.lane.b32.xlu0 %v1298, 90
    %v1302 = vpop.permute.xlu0 %1301
    %1303 = vrot.lane.b32.xlu0 %v1299, 90
    %v1304 = vpop.permute.xlu0 %1303
    %1305 = vrot.lane.b32.xlu0 %v1300, 90
    %v1306 = vpop.permute.xlu0 %1305
    %v1307 = vsel %vm435, %v1302, %v1304
    %v1308 = vsel %vm435, %v1304, %v1306
    %v1312 = vadd.f32 %v1262, %v1307
    %v1313 = vadd.f32 %v1263, %v1308
    %v1314 = vadd.f32 %v1264, %v1306
    %s1315 = sld [smem:[#allocation2 + $0x9a]]
    %v1316 = vstv %s1315
    %v1317 = vmul.f32 %v1316, %v903
    %v1318 = vmul.f32 %v1316, %v904
    %v1319 = vmul.f32 %v1316, %v905
    %v1323 = vrot.slane %v1317, 4
    %v1324 = vrot.slane %v1318, 4
    %v1325 = vrot.slane %v1319, 4
    %1326 = vrot.lane.b32.xlu0 %v1323, 90
    %v1327 = vpop.permute.xlu0 %1326
    %1328 = vrot.lane.b32.xlu0 %v1324, 90
    %v1329 = vpop.permute.xlu0 %1328
    %1330 = vrot.lane.b32.xlu0 %v1325, 90
    %v1331 = vpop.permute.xlu0 %1330
    %v1332 = vsel %vm435, %v1327, %v1329
    %v1333 = vsel %vm435, %v1329, %v1331
    %v1337 = vadd.f32 %v1287, %v1332
    %v1338 = vadd.f32 %v1288, %v1333
    %v1339 = vadd.f32 %v1289, %v1331
    %v1340 = vld [vmem:[%s3] sm:$0xc0]
    %v1341 = vld [vmem:[%s3 + $0x8] sm:$0xc0]
    %v1342 = vld [vmem:[%s3 + $0x10] sm:$0xc0]
    %s1343 = sld [smem:[#allocation2 + $0x1b]]
    %v1344 = vstv %s1343
    %v1345 = vmul.f32 %v1344, %v1340
    %v1346 = vmul.f32 %v1344, %v1341
    %v1347 = vmul.f32 %v1344, %v1342
    %v1351 = vrot.slane %v1345, 6
    %v1352 = vrot.slane %v1346, 6
    %v1353 = vrot.slane %v1347, 6
    %v1357 = vadd.f32 %v1312, %v1351
    %v1358 = vadd.f32 %v1313, %v1352
    %v1359 = vadd.f32 %v1314, %v1353
    %s1360 = sld [smem:[#allocation2 + $0x9b]]
    %v1361 = vstv %s1360
    %v1362 = vmul.f32 %v1361, %v1340
    %v1363 = vmul.f32 %v1361, %v1341
    %v1364 = vmul.f32 %v1361, %v1342
    %v1368 = vrot.slane %v1362, 6
    %v1369 = vrot.slane %v1363, 6
    %v1370 = vrot.slane %v1364, 6
    %v1374 = vadd.f32 %v1337, %v1368
    %v1375 = vadd.f32 %v1338, %v1369
    %v1376 = vadd.f32 %v1339, %v1370
    %s1377 = sld [smem:[#allocation2 + $0x1c]]
    %v1378 = vstv %s1377
    %v1379 = vmul.f32 %v1378, %v1340
    %v1380 = vmul.f32 %v1378, %v1341
    %v1381 = vmul.f32 %v1378, %v1342
    %v1385 = vrot.slane %v1379, 6
    %v1386 = vrot.slane %v1380, 6
    %v1387 = vrot.slane %v1381, 6
    %1388 = vrot.lane.b32.xlu0 %v1385, 127
    %v1389 = vpop.permute.xlu0 %1388
    %1390 = vrot.lane.b32.xlu0 %v1386, 127
    %v1391 = vpop.permute.xlu0 %1390
    %1392 = vrot.lane.b32.xlu0 %v1387, 127
    %v1393 = vpop.permute.xlu0 %1392
    %v1394 = vsel %vm120, %v1389, %v1391
    %v1395 = vsel %vm120, %v1391, %v1393
    %v1399 = vadd.f32 %v1357, %v1394
    %v1400 = vadd.f32 %v1358, %v1395
    %v1401 = vadd.f32 %v1359, %v1393
    %s1402 = sld [smem:[#allocation2 + $0x9c]]
    %v1403 = vstv %s1402
    %v1404 = vmul.f32 %v1403, %v1340
    %v1405 = vmul.f32 %v1403, %v1341
    %v1406 = vmul.f32 %v1403, %v1342
    %v1410 = vrot.slane %v1404, 6
    %v1411 = vrot.slane %v1405, 6
    %v1412 = vrot.slane %v1406, 6
    %1413 = vrot.lane.b32.xlu0 %v1410, 127
    %v1414 = vpop.permute.xlu0 %1413
    %1415 = vrot.lane.b32.xlu0 %v1411, 127
    %v1416 = vpop.permute.xlu0 %1415
    %1417 = vrot.lane.b32.xlu0 %v1412, 127
    %v1418 = vpop.permute.xlu0 %1417
    %v1419 = vsel %vm120, %v1414, %v1416
    %v1420 = vsel %vm120, %v1416, %v1418
    %v1424 = vadd.f32 %v1374, %v1419
    %v1425 = vadd.f32 %v1375, %v1420
    %v1426 = vadd.f32 %v1376, %v1418
    %s1427 = sld [smem:[#allocation2 + $0x1d]]
    %v1428 = vstv %s1427
    %v1429 = vmul.f32 %v1428, %v1340
    %v1430 = vmul.f32 %v1428, %v1341
    %v1431 = vmul.f32 %v1428, %v1342
    %v1435 = vrot.slane %v1429, 6
    %v1436 = vrot.slane %v1430, 6
    %v1437 = vrot.slane %v1431, 6
    %1438 = vrot.lane.b32.xlu0 %v1435, 126
    %v1439 = vpop.permute.xlu0 %1438
    %1440 = vrot.lane.b32.xlu0 %v1436, 126
    %v1441 = vpop.permute.xlu0 %1440
    %1442 = vrot.lane.b32.xlu0 %v1437, 126
    %v1443 = vpop.permute.xlu0 %1442
    %v1444 = vsel %vm165, %v1439, %v1441
    %v1445 = vsel %vm165, %v1441, %v1443
    %v1449 = vadd.f32 %v1399, %v1444
    %v1450 = vadd.f32 %v1400, %v1445
    %v1451 = vadd.f32 %v1401, %v1443
    %s1452 = sld [smem:[#allocation2 + $0x9d]]
    %v1453 = vstv %s1452
    %v1454 = vmul.f32 %v1453, %v1340
    %v1455 = vmul.f32 %v1453, %v1341
    %v1456 = vmul.f32 %v1453, %v1342
    %v1460 = vrot.slane %v1454, 6
    %v1461 = vrot.slane %v1455, 6
    %v1462 = vrot.slane %v1456, 6
    %1463 = vrot.lane.b32.xlu0 %v1460, 126
    %v1464 = vpop.permute.xlu0 %1463
    %1465 = vrot.lane.b32.xlu0 %v1461, 126
    %v1466 = vpop.permute.xlu0 %1465
    %1467 = vrot.lane.b32.xlu0 %v1462, 126
    %v1468 = vpop.permute.xlu0 %1467
    %v1469 = vsel %vm165, %v1464, %v1466
    %v1470 = vsel %vm165, %v1466, %v1468
    %v1474 = vadd.f32 %v1424, %v1469
    %v1475 = vadd.f32 %v1425, %v1470
    %v1476 = vadd.f32 %v1426, %v1468
    %s1477 = sld [smem:[#allocation2 + $0x1e]]
    %v1478 = vstv %s1477
    %v1479 = vmul.f32 %v1478, %v1340
    %v1480 = vmul.f32 %v1478, %v1341
    %v1481 = vmul.f32 %v1478, %v1342
    %v1485 = vrot.slane %v1479, 6
    %v1486 = vrot.slane %v1480, 6
    %v1487 = vrot.slane %v1481, 6
    %1488 = vrot.lane.b32.xlu0 %v1485, 110
    %v1489 = vpop.permute.xlu0 %1488
    %1490 = vrot.lane.b32.xlu0 %v1486, 110
    %v1491 = vpop.permute.xlu0 %1490
    %1492 = vrot.lane.b32.xlu0 %v1487, 110
    %v1493 = vpop.permute.xlu0 %1492
    %v1494 = vsel %vm210, %v1489, %v1491
    %v1495 = vsel %vm210, %v1491, %v1493
    %v1499 = vadd.f32 %v1449, %v1494
    %v1500 = vadd.f32 %v1450, %v1495
    %v1501 = vadd.f32 %v1451, %v1493
    %s1502 = sld [smem:[#allocation2 + $0x9e]]
    %v1503 = vstv %s1502
    %v1504 = vmul.f32 %v1503, %v1340
    %v1505 = vmul.f32 %v1503, %v1341
    %v1506 = vmul.f32 %v1503, %v1342
    %v1510 = vrot.slane %v1504, 6
    %v1511 = vrot.slane %v1505, 6
    %v1512 = vrot.slane %v1506, 6
    %1513 = vrot.lane.b32.xlu0 %v1510, 110
    %v1514 = vpop.permute.xlu0 %1513
    %1515 = vrot.lane.b32.xlu0 %v1511, 110
    %v1516 = vpop.permute.xlu0 %1515
    %1517 = vrot.lane.b32.xlu0 %v1512, 110
    %v1518 = vpop.permute.xlu0 %1517
    %v1519 = vsel %vm210, %v1514, %v1516
    %v1520 = vsel %vm210, %v1516, %v1518
    %v1524 = vadd.f32 %v1474, %v1519
    %v1525 = vadd.f32 %v1475, %v1520
    %v1526 = vadd.f32 %v1476, %v1518
    %s1527 = sld [smem:[#allocation2 + $0x1f]]
    %v1528 = vstv %s1527
    %v1529 = vmul.f32 %v1528, %v1340
    %v1530 = vmul.f32 %v1528, %v1341
    %v1531 = vmul.f32 %v1528, %v1342
    %v1535 = vrot.slane %v1529, 6
    %v1536 = vrot.slane %v1530, 6
    %v1537 = vrot.slane %v1531, 6
    %1538 = vrot.lane.b32.xlu0 %v1535, 109
    %v1539 = vpop.permute.xlu0 %1538
    %1540 = vrot.lane.b32.xlu0 %v1536, 109
    %v1541 = vpop.permute.xlu0 %1540
    %1542 = vrot.lane.b32.xlu0 %v1537, 109
    %v1543 = vpop.permute.xlu0 %1542
    %v1544 = vsel %vm255, %v1539, %v1541
    %v1545 = vsel %vm255, %v1541, %v1543
    %v1549 = vadd.f32 %v1499, %v1544
    %v1550 = vadd.f32 %v1500, %v1545
    %v1551 = vadd.f32 %v1501, %v1543
    %s1552 = sld [smem:[#allocation2 + $0x9f]]
    %v1553 = vstv %s1552
    %v1554 = vmul.f32 %v1553, %v1340
    %v1555 = vmul.f32 %v1553, %v1341
    %v1556 = vmul.f32 %v1553, %v1342
    %v1560 = vrot.slane %v1554, 6
    %v1561 = vrot.slane %v1555, 6
    %v1562 = vrot.slane %v1556, 6
    %1563 = vrot.lane.b32.xlu0 %v1560, 109
    %v1564 = vpop.permute.xlu0 %1563
    %1565 = vrot.lane.b32.xlu0 %v1561, 109
    %v1566 = vpop.permute.xlu0 %1565
    %1567 = vrot.lane.b32.xlu0 %v1562, 109
    %v1568 = vpop.permute.xlu0 %1567
    %v1569 = vsel %vm255, %v1564, %v1566
    %v1570 = vsel %vm255, %v1566, %v1568
    %v1574 = vadd.f32 %v1524, %v1569
    %v1575 = vadd.f32 %v1525, %v1570
    %v1576 = vadd.f32 %v1526, %v1568
    %s1577 = sld [smem:[#allocation2 + $0x20]]
    %v1578 = vstv %s1577
    %v1579 = vmul.f32 %v1578, %v1340
    %v1580 = vmul.f32 %v1578, %v1341
    %v1581 = vmul.f32 %v1578, %v1342
    %v1585 = vrot.slane %v1579, 6
    %v1586 = vrot.slane %v1580, 6
    %v1587 = vrot.slane %v1581, 6
    %1588 = vrot.lane.b32.xlu0 %v1585, 108
    %v1589 = vpop.permute.xlu0 %1588
    %1590 = vrot.lane.b32.xlu0 %v1586, 108
    %v1591 = vpop.permute.xlu0 %1590
    %1592 = vrot.lane.b32.xlu0 %v1587, 108
    %v1593 = vpop.permute.xlu0 %1592
    %v1594 = vsel %vm300, %v1589, %v1591
    %v1595 = vsel %vm300, %v1591, %v1593
    %v1599 = vadd.f32 %v1549, %v1594
    %v1600 = vadd.f32 %v1550, %v1595
    %v1601 = vadd.f32 %v1551, %v1593
    %s1602 = sld [smem:[#allocation2 + $0xa0]]
    %v1603 = vstv %s1602
    %v1604 = vmul.f32 %v1603, %v1340
    %v1605 = vmul.f32 %v1603, %v1341
    %v1606 = vmul.f32 %v1603, %v1342
    %v1610 = vrot.slane %v1604, 6
    %v1611 = vrot.slane %v1605, 6
    %v1612 = vrot.slane %v1606, 6
    %1613 = vrot.lane.b32.xlu0 %v1610, 108
    %v1614 = vpop.permute.xlu0 %1613
    %1615 = vrot.lane.b32.xlu0 %v1611, 108
    %v1616 = vpop.permute.xlu0 %1615
    %1617 = vrot.lane.b32.xlu0 %v1612, 108
    %v1618 = vpop.permute.xlu0 %1617
    %v1619 = vsel %vm300, %v1614, %v1616
    %v1620 = vsel %vm300, %v1616, %v1618
    %v1624 = vadd.f32 %v1574, %v1619
    %v1625 = vadd.f32 %v1575, %v1620
    %v1626 = vadd.f32 %v1576, %v1618
    %s1627 = sld [smem:[#allocation2 + $0x21]]
    %v1628 = vstv %s1627
    %v1629 = vmul.f32 %v1628, %v1340
    %v1630 = vmul.f32 %v1628, %v1341
    %v1631 = vmul.f32 %v1628, %v1342
    %v1635 = vrot.slane %v1629, 6
    %v1636 = vrot.slane %v1630, 6
    %v1637 = vrot.slane %v1631, 6
    %1638 = vrot.lane.b32.xlu0 %v1635, 92
    %v1639 = vpop.permute.xlu0 %1638
    %1640 = vrot.lane.b32.xlu0 %v1636, 92
    %v1641 = vpop.permute.xlu0 %1640
    %1642 = vrot.lane.b32.xlu0 %v1637, 92
    %v1643 = vpop.permute.xlu0 %1642
    %v1644 = vsel %vm345, %v1639, %v1641
    %v1645 = vsel %vm345, %v1641, %v1643
    %v1649 = vadd.f32 %v1599, %v1644
    %v1650 = vadd.f32 %v1600, %v1645
    %v1651 = vadd.f32 %v1601, %v1643
    %s1652 = sld [smem:[#allocation2 + $0xa1]]
    %v1653 = vstv %s1652
    %v1654 = vmul.f32 %v1653, %v1340
    %v1655 = vmul.f32 %v1653, %v1341
    %v1656 = vmul.f32 %v1653, %v1342
    %v1660 = vrot.slane %v1654, 6
    %v1661 = vrot.slane %v1655, 6
    %v1662 = vrot.slane %v1656, 6
    %1663 = vrot.lane.b32.xlu0 %v1660, 92
    %v1664 = vpop.permute.xlu0 %1663
    %1665 = vrot.lane.b32.xlu0 %v1661, 92
    %v1666 = vpop.permute.xlu0 %1665
    %1667 = vrot.lane.b32.xlu0 %v1662, 92
    %v1668 = vpop.permute.xlu0 %1667
    %v1669 = vsel %vm345, %v1664, %v1666
    %v1670 = vsel %vm345, %v1666, %v1668
    %v1674 = vadd.f32 %v1624, %v1669
    %v1675 = vadd.f32 %v1625, %v1670
    %v1676 = vadd.f32 %v1626, %v1668
    %s1677 = sld [smem:[#allocation2 + $0x22]]
    %v1678 = vstv %s1677
    %v1679 = vmul.f32 %v1678, %v1340
    %v1680 = vmul.f32 %v1678, %v1341
    %v1681 = vmul.f32 %v1678, %v1342
    %v1685 = vrot.slane %v1679, 6
    %v1686 = vrot.slane %v1680, 6
    %v1687 = vrot.slane %v1681, 6
    %1688 = vrot.lane.b32.xlu0 %v1685, 91
    %v1689 = vpop.permute.xlu0 %1688
    %1690 = vrot.lane.b32.xlu0 %v1686, 91
    %v1691 = vpop.permute.xlu0 %1690
    %1692 = vrot.lane.b32.xlu0 %v1687, 91
    %v1693 = vpop.permute.xlu0 %1692
    %v1694 = vsel %vm390, %v1689, %v1691
    %v1695 = vsel %vm390, %v1691, %v1693
    %v1699 = vadd.f32 %v1649, %v1694
    %v1700 = vadd.f32 %v1650, %v1695
    %v1701 = vadd.f32 %v1651, %v1693
    %s1702 = sld [smem:[#allocation2 + $0xa2]]
    %v1703 = vstv %s1702
    %v1704 = vmul.f32 %v1703, %v1340
    %v1705 = vmul.f32 %v1703, %v1341
    %v1706 = vmul.f32 %v1703, %v1342
    %v1710 = vrot.slane %v1704, 6
    %v1711 = vrot.slane %v1705, 6
    %v1712 = vrot.slane %v1706, 6
    %1713 = vrot.lane.b32.xlu0 %v1710, 91
    %v1714 = vpop.permute.xlu0 %1713
    %1715 = vrot.lane.b32.xlu0 %v1711, 91
    %v1716 = vpop.permute.xlu0 %1715
    %1717 = vrot.lane.b32.xlu0 %v1712, 91
    %v1718 = vpop.permute.xlu0 %1717
    %v1719 = vsel %vm390, %v1714, %v1716
    %v1720 = vsel %vm390, %v1716, %v1718
    %v1724 = vadd.f32 %v1674, %v1719
    %v1725 = vadd.f32 %v1675, %v1720
    %v1726 = vadd.f32 %v1676, %v1718
    %s1727 = sld [smem:[#allocation2 + $0x23]]
    %v1728 = vstv %s1727
    %v1729 = vmul.f32 %v1728, %v1340
    %v1730 = vmul.f32 %v1728, %v1341
    %v1731 = vmul.f32 %v1728, %v1342
    %v1735 = vrot.slane %v1729, 6
    %v1736 = vrot.slane %v1730, 6
    %v1737 = vrot.slane %v1731, 6
    %1738 = vrot.lane.b32.xlu0 %v1735, 90
    %v1739 = vpop.permute.xlu0 %1738
    %1740 = vrot.lane.b32.xlu0 %v1736, 90
    %v1741 = vpop.permute.xlu0 %1740
    %1742 = vrot.lane.b32.xlu0 %v1737, 90
    %v1743 = vpop.permute.xlu0 %1742
    %v1744 = vsel %vm435, %v1739, %v1741
    %v1745 = vsel %vm435, %v1741, %v1743
    %v1749 = vadd.f32 %v1699, %v1744
    %v1750 = vadd.f32 %v1700, %v1745
    %v1751 = vadd.f32 %v1701, %v1743
    %s1752 = sld [smem:[#allocation2 + $0xa3]]
    %v1753 = vstv %s1752
    %v1754 = vmul.f32 %v1753, %v1340
    %v1755 = vmul.f32 %v1753, %v1341
    %v1756 = vmul.f32 %v1753, %v1342
    %v1760 = vrot.slane %v1754, 6
    %v1761 = vrot.slane %v1755, 6
    %v1762 = vrot.slane %v1756, 6
    %1763 = vrot.lane.b32.xlu0 %v1760, 90
    %v1764 = vpop.permute.xlu0 %1763
    %1765 = vrot.lane.b32.xlu0 %v1761, 90
    %v1766 = vpop.permute.xlu0 %1765
    %1767 = vrot.lane.b32.xlu0 %v1762, 90
    %v1768 = vpop.permute.xlu0 %1767
    %v1769 = vsel %vm435, %v1764, %v1766
    %v1770 = vsel %vm435, %v1766, %v1768
    %v1774 = vadd.f32 %v1724, %v1769
    %v1775 = vadd.f32 %v1725, %v1770
    %v1776 = vadd.f32 %v1726, %v1768
    %1778 = vrot.lane.b32.xlu0 %v1749, 126
    %v1779 = vpop.permute.xlu0 %1778
    %1781 = vrot.lane.b32.xlu0 %v1749, 124
    %v1782 = vpop.permute.xlu0 %1781
    %1784 = vrot.lane.b32.xlu0 %v1749, 122
    %v1785 = vpop.permute.xlu0 %1784
    %1787 = vrot.lane.b32.xlu0 %v1749, 120
    %v1788 = vpop.permute.xlu0 %1787
    %1790 = vrot.lane.b32.xlu0 %v1749, 118
    %v1791 = vpop.permute.xlu0 %1790
    %1793 = vrot.lane.b32.xlu0 %v1749, 116
    %v1794 = vpop.permute.xlu0 %1793
    %1797 = vrot.lane.b32.xlu0 %v1749, 114
    %v1798 = vpop.permute.xlu0 %1797
    %1799 = vrot.lane.b32.xlu0 %v1750, 114
    %v1800 = vpop.permute.xlu0 %1799
    %vm1801 = vcmask 932864
    %v1802 = vsel %vm1801, %v1798, %v1800
    %1804 = vrot.lane.b32.xlu0 %v1750, 112
    %v1805 = vpop.permute.xlu0 %1804
    %1807 = vrot.lane.b32.xlu0 %v1750, 110
    %v1808 = vpop.permute.xlu0 %1807
    %1810 = vrot.lane.b32.xlu0 %v1750, 108
    %v1811 = vpop.permute.xlu0 %1810
    %1813 = vrot.lane.b32.xlu0 %v1750, 106
    %v1814 = vpop.permute.xlu0 %1813
    %1816 = vrot.lane.b32.xlu0 %v1750, 104
    %v1817 = vpop.permute.xlu0 %1816
    %1819 = vrot.lane.b32.xlu0 %v1750, 102
    %v1820 = vpop.permute.xlu0 %1819
    %1823 = vrot.lane.b32.xlu0 %v1750, 100
    %v1824 = vpop.permute.xlu0 %1823
    %1825 = vrot.lane.b32.xlu0 %v1751, 100
    %v1826 = vpop.permute.xlu0 %1825
    %vm1827 = vcmask 818176
    %v1828 = vsel %vm1827, %v1824, %v1826
    %1830 = vrot.lane.b32.xlu0 %v1751, 98
    %v1831 = vpop.permute.xlu0 %1830
    %vm1833 = vcmask 130048
    %v1834 = vsel %vm1833, %v1749, %v1779
    %vm1835 = vcmask 261120
    %v1836 = vsel %vm1835, %v1834, %v1782
    %vm1837 = vcmask 392192
    %v1838 = vsel %vm1837, %v1836, %v1785
    %vm1839 = vcmask 523264
    %v1840 = vsel %vm1839, %v1838, %v1788
    %vm1841 = vcmask 654336
    %v1842 = vsel %vm1841, %v1840, %v1791
    %vm1843 = vcmask 785408
    %v1844 = vsel %vm1843, %v1842, %v1794
    %vm1845 = vcmask 916480
    %v1846 = vsel %vm1845, %v1844, %v1802
    %v1847 = vsel %vm1833, %v1805, %v1808
    %v1848 = vsel %vm1835, %v1847, %v1811
    %v1849 = vsel %vm1837, %v1848, %v1814
    %v1850 = vsel %vm1839, %v1849, %v1817
    %v1851 = vsel %vm1841, %v1850, %v1820
    %v1852 = vsel %vm1843, %v1851, %v1828
    %v1853 = vsel %vm1845, %v1852, %v1831
    %vm1854 = vcmask 1041408
    %v1855 = vsel %vm1854, %v1846, 0.0
    %v1856 = vsel %vm1854, %v1853, 0.0
    %v1857 = vadd.f32 %v1855, %v1856
    %1858 = vadd.xlane.f32.xlu0 %v1857
    %v1859 = vpop.xlane.xlu0 %1858
    %v1860 = vmul.f32 %v1859, 0.00390625
    %v1861 = vsub.f32 %v1846, %v1860
    %v1862 = vsub.f32 %v1853, %v1860
    %v1863 = vmul.f32 %v1861, %v1861
    %v1864 = vmul.f32 %v1862, %v1862
    %v1865 = vsel %vm1854, %v1863, 0.0
    %v1866 = vsel %vm1854, %v1864, 0.0
    %v1867 = vadd.f32 %v1865, %v1866
    %1868 = vadd.xlane.f32.xlu0 %v1867
    %v1869 = vpop.xlane.xlu0 %1868
    %v1870 = vmul.f32 %v1869, 0.00390625
    %v1871 = vadd.f32 %v1870, 1e-05
    %v1872 = vrsqrt.pop %v1871
    %s1873 = sld [smem:[#allocation5]]
    %v1874 = vstv %s1873
    %v1875 = vmul.f32 %v1872, %v1874
    %v1876 = vmul.f32 %v1861, %v1875
    %v1877 = vmul.f32 %v1862, %v1875
    %s1878 = sld [smem:[#allocation7]]
    %v1879 = vstv %s1878
    %v1880 = vadd.f32 %v1876, %v1879
    %v1881 = vadd.f32 %v1877, %v1879
    %v1882 = vmax.f32 %v1880, 0.0
    %v1883 = vmax.f32 %v1881, 0.0
    %1885 = vrot.lane.b32.xlu0 %v1774, 126
    %v1886 = vpop.permute.xlu0 %1885
    %1888 = vrot.lane.b32.xlu0 %v1774, 124
    %v1889 = vpop.permute.xlu0 %1888
    %1891 = vrot.lane.b32.xlu0 %v1774, 122
    %v1892 = vpop.permute.xlu0 %1891
    %1894 = vrot.lane.b32.xlu0 %v1774, 120
    %v1895 = vpop.permute.xlu0 %1894
    %1897 = vrot.lane.b32.xlu0 %v1774, 118
    %v1898 = vpop.permute.xlu0 %1897
    %1900 = vrot.lane.b32.xlu0 %v1774, 116
    %v1901 = vpop.permute.xlu0 %1900
    %1904 = vrot.lane.b32.xlu0 %v1774, 114
    %v1905 = vpop.permute.xlu0 %1904
    %1906 = vrot.lane.b32.xlu0 %v1775, 114
    %v1907 = vpop.permute.xlu0 %1906
    %v1908 = vsel %vm1801, %v1905, %v1907
    %1910 = vrot.lane.b32.xlu0 %v1775, 112
    %v1911 = vpop.permute.xlu0 %1910
    %1913 = vrot.lane.b32.xlu0 %v1775, 110
    %v1914 = vpop.permute.xlu0 %1913
    %1916 = vrot.lane.b32.xlu0 %v1775, 108
    %v1917 = vpop.permute.xlu0 %1916
    %1919 = vrot.lane.b32.xlu0 %v1775, 106
    %v1920 = vpop.permute.xlu0 %1919
    %1922 = vrot.lane.b32.xlu0 %v1775, 104
    %v1923 = vpop.permute.xlu0 %1922
    %1925 = vrot.lane.b32.xlu0 %v1775, 102
    %v1926 = vpop.permute.xlu0 %1925
    %1929 = vrot.lane.b32.xlu0 %v1775, 100
    %v1930 = vpop.permute.xlu0 %1929
    %1931 = vrot.lane.b32.xlu0 %v1776, 100
    %v1932 = vpop.permute.xlu0 %1931
    %v1933 = vsel %vm1827, %v1930, %v1932
    %1935 = vrot.lane.b32.xlu0 %v1776, 98
    %v1936 = vpop.permute.xlu0 %1935
    %v1938 = vsel %vm1833, %v1774, %v1886
    %v1939 = vsel %vm1835, %v1938, %v1889
    %v1940 = vsel %vm1837, %v1939, %v1892
    %v1941 = vsel %vm1839, %v1940, %v1895
    %v1942 = vsel %vm1841, %v1941, %v1898
    %v1943 = vsel %vm1843, %v1942, %v1901
    %v1944 = vsel %vm1845, %v1943, %v1908
    %v1945 = vsel %vm1833, %v1911, %v1914
    %v1946 = vsel %vm1835, %v1945, %v1917
    %v1947 = vsel %vm1837, %v1946, %v1920
    %v1948 = vsel %vm1839, %v1947, %v1923
    %v1949 = vsel %vm1841, %v1948, %v1926
    %v1950 = vsel %vm1843, %v1949, %v1933
    %v1951 = vsel %vm1845, %v1950, %v1936
    %v1952 = vsel %vm1854, %v1944, 0.0
    %v1953 = vsel %vm1854, %v1951, 0.0
    %v1954 = vadd.f32 %v1952, %v1953
    %1955 = vadd.xlane.f32.xlu0 %v1954
    %v1956 = vpop.xlane.xlu0 %1955
    %v1957 = vmul.f32 %v1956, 0.00390625
    %v1958 = vsub.f32 %v1944, %v1957
    %v1959 = vsub.f32 %v1951, %v1957
    %v1960 = vmul.f32 %v1958, %v1958
    %v1961 = vmul.f32 %v1959, %v1959
    %v1962 = vsel %vm1854, %v1960, 0.0
    %v1963 = vsel %vm1854, %v1961, 0.0
    %v1964 = vadd.f32 %v1962, %v1963
    %1965 = vadd.xlane.f32.xlu0 %v1964
    %v1966 = vpop.xlane.xlu0 %1965
    %v1967 = vmul.f32 %v1966, 0.00390625
    %v1968 = vadd.f32 %v1967, 1e-05
    %v1969 = vrsqrt.pop %v1968
    %s1970 = sld [smem:[#allocation5 + $0x1]]
    %v1971 = vstv %s1970
    %v1972 = vmul.f32 %v1969, %v1971
    %v1973 = vmul.f32 %v1958, %v1972
    %v1974 = vmul.f32 %v1959, %v1972
    %s1975 = sld [smem:[#allocation7 + $0x1]]
    %v1976 = vstv %s1975
    %v1977 = vadd.f32 %v1973, %v1976
    %v1978 = vadd.f32 %v1974, %v1976
    %v1979 = vmax.f32 %v1977, 0.0
    %v1980 = vmax.f32 %v1978, 0.0
    %v1981 = vlaneseq
    %v1982 = vshrl.u32 %v1981, 7
    %v1983 = vsub.s32 0, %v1982
    %v1984 = vrot.slane %v1882, %v1983
    %v1985 = vlaneseq
    %v1986 = vshrl.u32 %v1985, 7
    %v1987 = vsub.s32 0, %v1986
    %v1988 = vrot.slane %v1883, %v1987
    %v1989 = vmul.f32 %v69, %v1984
    %v1990 = vmul.f32 %v69, %v1988
    %v1991 = vadd.f32 %v1989, 0.0
    %v1992 = vadd.f32 %v1990, 0.0
    %v1993 = vlaneseq
    %v1994 = vshrl.u32 %v1993, 7
    %v1995 = vsub.s32 0, %v1994
    %v1996 = vrot.slane %v1979, %v1995
    %v1997 = vlaneseq
    %v1998 = vshrl.u32 %v1997, 7
    %v1999 = vsub.s32 0, %v1998
    %v2000 = vrot.slane %v1980, %v1999
    %v2001 = vmul.f32 %v73, %v1996
    %v2002 = vmul.f32 %v73, %v2000
    %v2003 = vadd.f32 %v1991, %v2001
    %v2004 = vadd.f32 %v1992, %v2002
    %v2005 = vadd.f32 %v2003, %v2004
    %2006 = vadd.xlane.f32.xlu0 %v2005
    %v2007 = vpop.xlane.xlu0 %2006
    %v2008 = vmul.f32 %v2007, %v81
    %vm2009 = vcmask 7168
    %v2010 = vsel %vm2009, %v2008, 0.0
    %2011 = vadd.xlane.f32.xlu0 %v2010
    %v2012 = vpop.xlane.xlu0 %2011
    %v2013 = vrot.slane %v2012, 4
    %v2014 = vadd.f32 %v2012, %v2013
    %v2015 = vrot.slane %v2014, 2
    %v2016 = vadd.f32 %v2014, %v2015
    %v2017 = vrot.slane %v2016, 1
    %v2018 = vadd.f32 %v2016, %v2017
    %s2019 = vtos %v2018
    %s2020 = smul.f32 %s2019, 0.0009765625
    %v2021 = vstv %s2020
    %v2022 = vmul.f32 %v81, %v2021
    %v2023 = vadd.f32 %v2022, 0.0
    %v2024 = vmul.f32 %v2007, %v86
    %v2025 = vsel %vm2009, %v2024, 0.0
    %2026 = vadd.xlane.f32.xlu0 %v2025
    %v2027 = vpop.xlane.xlu0 %2026
    %v2028 = vrot.slane %v2027, 4
    %v2029 = vadd.f32 %v2027, %v2028
    %v2030 = vrot.slane %v2029, 2
    %v2031 = vadd.f32 %v2029, %v2030
    %v2032 = vrot.slane %v2031, 1
    %v2033 = vadd.f32 %v2031, %v2032
    %s2034 = vtos %v2033
    %s2035 = smul.f32 %s2034, 0.0009765625
    %v2036 = vstv %s2035
    %v2037 = vmul.f32 %v86, %v2036
    %v2038 = vadd.f32 %v2023, %v2037
    %v2039 = vsub.f32 %v2003, %v2038
    %v2040 = vsub.f32 %v2004, %v2038
    %v2041 = vmul.f32 %v2039, %v2039
    %v2042 = vmul.f32 %v2040, %v2040
    %v2043 = vadd.f32 %v2041, %v2042
    %2044 = vadd.xlane.f32.xlu0 %v2043
    %v2045 = vpop.xlane.xlu0 %2044
    %v2046 = vmul.f32 %v2045, %v81
    %v2047 = vsel %vm2009, %v2046, 0.0
    %2048 = vadd.xlane.f32.xlu0 %v2047
    %v2049 = vpop.xlane.xlu0 %2048
    %v2050 = vrot.slane %v2049, 4
    %v2051 = vadd.f32 %v2049, %v2050
    %v2052 = vrot.slane %v2051, 2
    %v2053 = vadd.f32 %v2051, %v2052
    %v2054 = vrot.slane %v2053, 1
    %v2055 = vadd.f32 %v2053, %v2054
    %s2056 = vtos %v2055
    %s2057 = smul.f32 %s2056, 0.0009765625
    %v2058 = vstv %s2057
    %v2059 = vmul.f32 %v81, %v2058
    %v2060 = vadd.f32 %v2059, 0.0
    %v2061 = vmul.f32 %v2045, %v86
    %v2062 = vsel %vm2009, %v2061, 0.0
    %2063 = vadd.xlane.f32.xlu0 %v2062
    %v2064 = vpop.xlane.xlu0 %2063
    %v2065 = vrot.slane %v2064, 4
    %v2066 = vadd.f32 %v2064, %v2065
    %v2067 = vrot.slane %v2066, 2
    %v2068 = vadd.f32 %v2066, %v2067
    %v2069 = vrot.slane %v2068, 1
    %v2070 = vadd.f32 %v2068, %v2069
    %s2071 = vtos %v2070
    %s2072 = smul.f32 %s2071, 0.0009765625
    %v2073 = vstv %s2072
    %v2074 = vmul.f32 %v86, %v2073
    %v2075 = vadd.f32 %v2060, %v2074
    %v2076 = vadd.f32 %v2075, 1e-05
    %v2077 = vrsqrt.pop %v2076
    %v2078 = vmul.f32 %v2077, %v63
    %2080 = vset.pattern.permute.xlu0 0
    %2081 = vperm.xlu0 %2080, %v2078
    %v2082 = vpop.permute.xlu0 %2081
    %v2084 = vmul.f32 %v2039, %v2082
    %v2085 = vmul.f32 %v2040, %v2082
    %2087 = vset.pattern.permute.xlu0 0
    %2088 = vperm.xlu0 %2087, %v64
    %v2089 = vpop.permute.xlu0 %2088
    %v2091 = vadd.f32 %v2084, %v2089
    %v2092 = vadd.f32 %v2085, %v2089
    %v2093 = vmax.f32 %v2091, 0.0
    %v2094 = vmax.f32 %v2092, 0.0
    %2095 = vst [vmem:[#allocation8] sm:$0xff] %v2093
    %2096 = vst [vmem:[#allocation8 + $0x8] sm:$0xff] %v2094
    %v2097 = vlaneseq
    %v2098 = vshrl.u32 %v2097, 7
    %v2099 = vsub.s32 1, %v2098
    %v2100 = vrot.slane %v1882, %v2099
    %v2101 = vlaneseq
    %v2102 = vshrl.u32 %v2101, 7
    %v2103 = vsub.s32 1, %v2102
    %v2104 = vrot.slane %v1883, %v2103
    %v2105 = vmul.f32 %v69, %v2100
    %v2106 = vmul.f32 %v69, %v2104
    %v2107 = vadd.f32 %v2105, 0.0
    %v2108 = vadd.f32 %v2106, 0.0
    %v2109 = vlaneseq
    %v2110 = vshrl.u32 %v2109, 7
    %v2111 = vsub.s32 1, %v2110
    %v2112 = vrot.slane %v1979, %v2111
    %v2113 = vlaneseq
    %v2114 = vshrl.u32 %v2113, 7
    %v2115 = vsub.s32 1, %v2114
    %v2116 = vrot.slane %v1980, %v2115
    %v2117 = vmul.f32 %v73, %v2112
    %v2118 = vmul.f32 %v73, %v2116
    %v2119 = vadd.f32 %v2107, %v2117
    %v2120 = vadd.f32 %v2108, %v2118
    %v2121 = vadd.f32 %v2119, %v2120
    %2122 = vadd.xlane.f32.xlu0 %v2121
    %v2123 = vpop.xlane.xlu0 %2122
    %v2124 = vmul.f32 %v2123, %v81
    %v2125 = vsel %vm2009, %v2124, 0.0
    %2126 = vadd.xlane.f32.xlu0 %v2125
    %v2127 = vpop.xlane.xlu0 %2126
    %v2128 = vrot.slane %v2127, 4
    %v2129 = vadd.f32 %v2127, %v2128
    %v2130 = vrot.slane %v2129, 2
    %v2131 = vadd.f32 %v2129, %v2130
    %v2132 = vrot.slane %v2131, 1
    %v2133 = vadd.f32 %v2131, %v2132
    %s2134 = vtos %v2133
    %s2135 = smul.f32 %s2134, 0.0009765625
    %v2136 = vstv %s2135
    %v2137 = vmul.f32 %v81, %v2136
    %v2138 = vadd.f32 %v2137, 0.0
    %v2139 = vmul.f32 %v2123, %v86
    %v2140 = vsel %vm2009, %v2139, 0.0
    %2141 = vadd.xlane.f32.xlu0 %v2140
    %v2142 = vpop.xlane.xlu0 %2141
    %v2143 = vrot.slane %v2142, 4
    %v2144 = vadd.f32 %v2142, %v2143
    %v2145 = vrot.slane %v2144, 2
    %v2146 = vadd.f32 %v2144, %v2145
    %v2147 = vrot.slane %v2146, 1
    %v2148 = vadd.f32 %v2146, %v2147
    %s2149 = vtos %v2148
    %s2150 = smul.f32 %s2149, 0.0009765625
    %v2151 = vstv %s2150
    %v2152 = vmul.f32 %v86, %v2151
    %v2153 = vadd.f32 %v2138, %v2152
    %v2154 = vsub.f32 %v2119, %v2153
    %v2155 = vsub.f32 %v2120, %v2153
    %v2156 = vmul.f32 %v2154, %v2154
    %v2157 = vmul.f32 %v2155, %v2155
    %v2158 = vadd.f32 %v2156, %v2157
    %2159 = vadd.xlane.f32.xlu0 %v2158
    %v2160 = vpop.xlane.xlu0 %2159
    %v2161 = vmul.f32 %v2160, %v81
    %v2162 = vsel %vm2009, %v2161, 0.0
    %2163 = vadd.xlane.f32.xlu0 %v2162
    %v2164 = vpop.xlane.xlu0 %2163
    %v2165 = vrot.slane %v2164, 4
    %v2166 = vadd.f32 %v2164, %v2165
    %v2167 = vrot.slane %v2166, 2
    %v2168 = vadd.f32 %v2166, %v2167
    %v2169 = vrot.slane %v2168, 1
    %v2170 = vadd.f32 %v2168, %v2169
    %s2171 = vtos %v2170
    %s2172 = smul.f32 %s2171, 0.0009765625
    %v2173 = vstv %s2172
    %v2174 = vmul.f32 %v81, %v2173
    %v2175 = vadd.f32 %v2174, 0.0
    %v2176 = vmul.f32 %v2160, %v86
    %v2177 = vsel %vm2009, %v2176, 0.0
    %2178 = vadd.xlane.f32.xlu0 %v2177
    %v2179 = vpop.xlane.xlu0 %2178
    %v2180 = vrot.slane %v2179, 4
    %v2181 = vadd.f32 %v2179, %v2180
    %v2182 = vrot.slane %v2181, 2
    %v2183 = vadd.f32 %v2181, %v2182
    %v2184 = vrot.slane %v2183, 1
    %v2185 = vadd.f32 %v2183, %v2184
    %s2186 = vtos %v2185
    %s2187 = smul.f32 %s2186, 0.0009765625
    %v2188 = vstv %s2187
    %v2189 = vmul.f32 %v86, %v2188
    %v2190 = vadd.f32 %v2175, %v2189
    %v2191 = vadd.f32 %v2190, 1e-05
    %v2192 = vrsqrt.pop %v2191
    %v2193 = vmul.f32 %v2192, %v63
    %2195 = vset.pattern.permute.xlu0 0
    %2196 = vperm.xlu0 %2195, %v2193
    %v2197 = vpop.permute.xlu0 %2196
    %v2199 = vmul.f32 %v2154, %v2197
    %v2200 = vmul.f32 %v2155, %v2197
    %v2201 = vadd.f32 %v2199, %v2089
    %v2202 = vadd.f32 %v2200, %v2089
    %v2203 = vmax.f32 %v2201, 0.0
    %v2204 = vmax.f32 %v2202, 0.0
    %s2205 = scalar_lea.vmem [#allocation8], 16
    %2206 = vst [vmem:[%s2205] sm:$0xff] %v2203
    %2207 = vst [vmem:[%s2205 + $0x8] sm:$0xff] %v2204
    // Predicated region
    $region42: #{tpu_custom_call.1} parent=1 // pred_check
      _
    $region43: #{tpu_custom_call.1} parent=1 // pred_check_branch
      %2209 = sbr.rel (0) target = $region45
    $region44: #{tpu_custom_call.1} parent=1 // pred_region
      %s2211 = ssub.s32 512, 512
      %2212 = vsyncadd [#allocation3], %s2211
      %s2213 = sshll.u32 [#allocation8], 4
      %s2214 = int_to_ptr.vmem [resolvable:$true] %s2213
      %2219 = dma.vmem_to_hbm [thread:$0]  %s2214, 512, %s7, [#allocation3], 256, 256, 16
    $region45: #{tpu_custom_call.1} parent=1 // pred_fallthru
      _
    // Predicated region
    $region46: #{tpu_custom_call.1} parent=1 // pred_check
      _
    $region47: #{tpu_custom_call.1} parent=1 // pred_check_branch
      %2221 = sbr.rel (0) target = $region49
    $region48: #{tpu_custom_call.1} parent=1 // pred_region
      %2222 = dma.done [#allocation3], 512
    $region49: #{tpu_custom_call.1} parent=1 // pred_fallthru
      _
    %2223 = vsyncpa [#allocation3], 1
    %2224 = vsyncpa [#allocation4], 1
    %2225 = vsyncpa [#allocation6], 1

</llo_original>
